<compile_context>
chip_gen: v7x
topology: tpu7x:2x2x1
jax: 0.10.0
libtpu: 0.0.40
codegen_flags: <defaults>
</compile_context>

<pallas_src>
import jax
import jax.numpy as jnp
from jax.experimental import pallas as pl
from jax.experimental.pallas import tpu as pltpu

HIDDEN1, HIDDEN2 = 1000, 200   # PyTorch hidden sizes
H1P, H2P = 1024, 256           # zero-padded hidden sizes (multiples of 256)


def _round_up(v, m):
    return ((v + m - 1) // m) * m


def _mlp_kernel(x_ref, w1_ref, b1_ref, w2_ref, b2_ref, w3_ref, b3_ref, o_ref):
    # fc_1 (bf16 x bf16 -> f32 acc) + (dropout = identity) + ReLU (f32 epilogue)
    h1 = jnp.dot(x_ref[...], w1_ref[...], preferred_element_type=jnp.float32)
    h1 = jnp.maximum(h1 + b1_ref[...], 0.0)
    # fc_2 + (dropout = identity) + ReLU
    h2 = jnp.dot(h1.astype(jnp.bfloat16), w2_ref[...],
                 preferred_element_type=jnp.float32)
    h2 = jnp.maximum(h2 + b2_ref[...], 0.0)
    # fc_3 as VPU multiply + lane reduction (w3 passed as a (1, H2P) f32 row);
    # padded lanes of h2 / w3 are exactly zero so they contribute nothing.
    logit = jnp.sum(h2 * w3_ref[...], axis=-1, keepdims=True) + b3_ref[...]
    o_ref[...] = jax.nn.sigmoid(logit)


def prepare_params(params):
    """Zero-pad hidden dims to (H1P, H2P), cast matmul weights to bf16."""
    w1 = jnp.pad(params["W1"], ((0, 0), (0, H1P - HIDDEN1))).astype(jnp.bfloat16)
    b1 = jnp.pad(params["b1"], ((0, 0), (0, H1P - HIDDEN1)))              # f32 (1, H1P)
    w2 = jnp.pad(params["W2"],
                 ((0, H1P - HIDDEN1), (0, H2P - HIDDEN2))).astype(jnp.bfloat16)
    b2 = jnp.pad(params["b2"], ((0, 0), (0, H2P - HIDDEN2)))              # f32 (1, H2P)
    w3_row = jnp.pad(params["W3"].T, ((0, 0), (0, H2P - HIDDEN2)))        # f32 (1, H2P)
    b3 = params["b3"]                                                     # f32 (1, 1)
    return dict(W1=w1, b1=b1, W2=w2, b2=b2, W3=w3_row, b3=b3)


def binary_classifier_forward(x, prepared, *, tile_b=256):
    """x: (B, input_dim) float32. prepared: output of prepare_params()."""
    B, input_dim = x.shape

    # Pad batch to a multiple of the batch tile (tile must be a multiple of 8).
    bp = _round_up(max(B, 8), 8)
    tile_b = min(tile_b, bp)
    bp = _round_up(bp, tile_b)
    if bp != B:
        x = jnp.pad(x, ((0, bp - B), (0, 0)))
    x_bf = x.astype(jnp.bfloat16)

    w1, b1 = prepared["W1"], prepared["b1"]
    w2, b2 = prepared["W2"], prepared["b2"]
    w3, b3 = prepared["W3"], prepared["b3"]

    resident = lambda shape: pl.BlockSpec(shape, lambda i: (0, 0))

    out = pl.pallas_call(
        _mlp_kernel,
        out_shape=jax.ShapeDtypeStruct((bp, 1), jnp.float32),
        grid=(bp // tile_b,),
        in_specs=[
            pl.BlockSpec((tile_b, input_dim), lambda i: (i, 0)),   # x tile
            resident(w1.shape), resident(b1.shape),                # fc_1 (resident)
            resident(w2.shape), resident(b2.shape),                # fc_2 (resident)
            resident(w3.shape), resident(b3.shape),                # fc_3 (resident)
        ],
        out_specs=pl.BlockSpec((tile_b, 1), lambda i: (i, 0)),
        compiler_params=pltpu.CompilerParams(
            dimension_semantics=("parallel",),
            vmem_limit_bytes=32 << 20,
        ),
    )(x_bf, w1, b1, w2, b2, w3, b3)

    return out[:B]


def init_params(key, input_dim):
    """nn.Linear-style init (U(-1/sqrt(fan_in), +)), weights stored (in, out)."""
    dims = [(input_dim, HIDDEN1), (HIDDEN1, HIDDEN2), (HIDDEN2, 1)]
    params = {}
    for i, (fan_in, fan_out) in enumerate(dims, start=1):
        key, kw, kb = jax.random.split(key, 3)
        bound = 1.0 / jnp.sqrt(jnp.float32(fan_in))
        params[f"W{i}"] = jax.random.uniform(
            kw, (fan_in, fan_out), jnp.float32, -bound, bound)
        params[f"b{i}"] = jax.random.uniform(
            kb, (1, fan_out), jnp.float32, -bound, bound)
    return params


def _ref_forward(x, params):
    """Plain-JAX reference emulating the kernel's bf16-input / f32-acc matmuls."""
    bf = lambda a: a.astype(jnp.bfloat16).astype(jnp.float32)
    hp = jax.lax.Precision.HIGHEST
    h1 = jnp.maximum(
        jnp.dot(bf(x), bf(params["W1"]), precision=hp) + params["b1"], 0.0)
    h2 = jnp.maximum(
        jnp.dot(bf(h1), bf(params["W2"]), precision=hp) + params["b2"], 0.0)
    logit = jnp.dot(h2, params["W3"], precision=hp) + params["b3"]
    return jax.nn.sigmoid(logit)


if __name__ == "__main__":
    key = jax.random.PRNGKey(0)
    k_x, k_p = jax.random.split(key)

    B, INPUT_DIM = 8, 256  # small synthetic shapes
    x = jax.random.normal(k_x, (B, INPUT_DIM), jnp.float32)
    params = init_params(k_p, INPUT_DIM)
    prepared = prepare_params(params)

    out = binary_classifier_forward(x, prepared)
    out = jax.block_until_ready(out)

    ref = _ref_forward(x, params)
    assert out.shape == (B, 1)
    assert jnp.allclose(out, ref, atol=2e-3, rtol=2e-3), (
        f"max abs diff {jnp.max(jnp.abs(out - ref))}")

    print("KERNEL_OK")
</pallas_src>

<mosaic_0001>
module attributes {stable_mosaic.version = 11 : i64} {
  func.func @_mlp_kernel(%arg0: i32, %arg1: memref<8x256xbf16, #tpu.memory_space<vmem>>, %arg2: memref<256x1024xbf16, #tpu.memory_space<vmem>>, %arg3: memref<1x1024xf32, #tpu.memory_space<vmem>>, %arg4: memref<1024x256xbf16, #tpu.memory_space<vmem>>, %arg5: memref<1x256xf32, #tpu.memory_space<vmem>>, %arg6: memref<1x256xf32, #tpu.memory_space<vmem>>, %arg7: memref<1x1xf32, #tpu.memory_space<vmem>>, %arg8: memref<8x1xf32, #tpu.memory_space<vmem>>) attributes {dimension_semantics = [#tpu.dimension_semantics<parallel>], iteration_bounds = array<i64: 1>, scalar_prefetch = 0 : i64, scratch_operands = 0 : i64, tpu.core_type = #tpu.core_type<tc>, window_params = [{transform_indices = @transform_0, window_bounds = array<i64: 8, 256>}, {pipeline_mode = #tpu.pipeline_mode<synchronous>, transform_indices = @transform_1, window_bounds = array<i64: 256, 1024>}, {pipeline_mode = #tpu.pipeline_mode<synchronous>, transform_indices = @transform_2, window_bounds = array<i64: 1, 1024>}, {pipeline_mode = #tpu.pipeline_mode<synchronous>, transform_indices = @transform_3, window_bounds = array<i64: 1024, 256>}, {pipeline_mode = #tpu.pipeline_mode<synchronous>, transform_indices = @transform_4, window_bounds = array<i64: 1, 256>}, {pipeline_mode = #tpu.pipeline_mode<synchronous>, transform_indices = @transform_5, window_bounds = array<i64: 1, 256>}, {pipeline_mode = #tpu.pipeline_mode<synchronous>, transform_indices = @transform_6, window_bounds = array<i64: 1, 1>}, {transform_indices = @transform_7, window_bounds = array<i64: 8, 1>}]} {
    %c0 = arith.constant 0 : index
    %c0_0 = arith.constant 0 : index
    %0 = vector.load %arg1[%c0, %c0_0] : memref<8x256xbf16, #tpu.memory_space<vmem>>, vector<8x256xbf16>
    %c0_1 = arith.constant 0 : index
    %c0_2 = arith.constant 0 : index
    %1 = vector.load %arg2[%c0_1, %c0_2] : memref<256x1024xbf16, #tpu.memory_space<vmem>>, vector<256x1024xbf16>
    %cst = arith.constant dense<0.000000e+00> : vector<8x1024xf32>
    %2 = tpu.matmul %0, %1, %cst {dimension_numbers = #tpu.dot_dimension_numbers<[1], [0], [0], [1], [0, 0, 1, 1], [], []>} : vector<8x256xbf16>, vector<256x1024xbf16>, vector<8x1024xf32> -> vector<8x1024xf32>
    %c0_3 = arith.constant 0 : index
    %c0_4 = arith.constant 0 : index
    %3 = vector.load %arg3[%c0_3, %c0_4] : memref<1x1024xf32, #tpu.memory_space<vmem>>, vector<1x1024xf32>
    %4 = vector.broadcast %3 : vector<1x1024xf32> to vector<8x1024xf32>
    %5 = arith.addf %2, %4 : vector<8x1024xf32>
    %cst_5 = arith.constant 0.000000e+00 : f32
    %6 = vector.broadcast %cst_5 : f32 to vector<8x1024xf32>
    %7 = arith.maximumf %5, %6 : vector<8x1024xf32>
    %8 = arith.truncf %7 : vector<8x1024xf32> to vector<8x1024xbf16>
    %c0_6 = arith.constant 0 : index
    %c0_7 = arith.constant 0 : index
    %9 = vector.load %arg4[%c0_6, %c0_7] : memref<1024x256xbf16, #tpu.memory_space<vmem>>, vector<1024x256xbf16>
    %cst_8 = arith.constant dense<0.000000e+00> : vector<8x256xf32>
    %10 = tpu.matmul %8, %9, %cst_8 {dimension_numbers = #tpu.dot_dimension_numbers<[1], [0], [0], [1], [0, 0, 1, 1], [], []>} : vector<8x1024xbf16>, vector<1024x256xbf16>, vector<8x256xf32> -> vector<8x256xf32>
    %c0_9 = arith.constant 0 : index
    %c0_10 = arith.constant 0 : index
    %11 = vector.load %arg5[%c0_9, %c0_10] : memref<1x256xf32, #tpu.memory_space<vmem>>, vector<1x256xf32>
    %12 = vector.broadcast %11 : vector<1x256xf32> to vector<8x256xf32>
    %13 = arith.addf %10, %12 : vector<8x256xf32>
    %cst_11 = arith.constant 0.000000e+00 : f32
    %14 = vector.broadcast %cst_11 : f32 to vector<8x256xf32>
    %15 = arith.maximumf %13, %14 : vector<8x256xf32>
    %c0_12 = arith.constant 0 : index
    %c0_13 = arith.constant 0 : index
    %16 = vector.load %arg6[%c0_12, %c0_13] : memref<1x256xf32, #tpu.memory_space<vmem>>, vector<1x256xf32>
    %17 = vector.broadcast %16 : vector<1x256xf32> to vector<8x256xf32>
    %18 = arith.mulf %15, %17 : vector<8x256xf32>
    %cst_14 = arith.constant dense<0.000000e+00> : vector<8xf32>
    %19 = vector.multi_reduction <add>, %18, %cst_14 [1] : vector<8x256xf32> to vector<8xf32>
    %20 = vector.shape_cast %19 : vector<8xf32> to vector<8x1xf32>
    %c0_15 = arith.constant 0 : index
    %c0_16 = arith.constant 0 : index
    %21 = vector.load %arg7[%c0_15, %c0_16] : memref<1x1xf32, #tpu.memory_space<vmem>>, vector<1x1xf32>
    %22 = vector.broadcast %21 : vector<1x1xf32> to vector<8x1xf32>
    %23 = arith.addf %20, %22 : vector<8x1xf32>
    %24 = arith.negf %23 : vector<8x1xf32>
    %25 = math.exp %24 : vector<8x1xf32>
    %cst_17 = arith.constant 1.000000e+00 : f32
    %26 = vector.broadcast %cst_17 : f32 to vector<8x1xf32>
    %27 = arith.addf %26, %25 : vector<8x1xf32>
    %28 = arith.divf %26, %27 : vector<8x1xf32>
    %c0_18 = arith.constant 0 : index
    %c0_19 = arith.constant 0 : index
    %29 = vector.load %arg8[%c0_18, %c0_19] : memref<8x1xf32, #tpu.memory_space<vmem>>, vector<8x1xf32>
    tpu.vector_store %arg8[%c0_18, %c0_19], %28 {strides = array<i32>} : memref<8x1xf32, #tpu.memory_space<vmem>>, vector<8x1xf32>,
    return
  }
  func.func @transform_0(%arg0: i32) -> (i32, i32) {
    %c0_i32 = arith.constant 0 : i32
    %c0_i32_0 = arith.constant 0 : i32
    return %arg0, %c0_i32 : i32, i32
  }
  func.func @transform_1(%arg0: i32) -> (i32, i32) {
    %c0_i32 = arith.constant 0 : i32
    %c0_i32_0 = arith.constant 0 : i32
    %c0_i32_1 = arith.constant 0 : i32
    return %c0_i32, %c0_i32_0 : i32, i32
  }
  func.func @transform_2(%arg0: i32) -> (i32, i32) {
    %c0_i32 = arith.constant 0 : i32
    %c0_i32_0 = arith.constant 0 : i32
    %c0_i32_1 = arith.constant 0 : i32
    return %c0_i32, %c0_i32_0 : i32, i32
  }
  func.func @transform_3(%arg0: i32) -> (i32, i32) {
    %c0_i32 = arith.constant 0 : i32
    %c0_i32_0 = arith.constant 0 : i32
    %c0_i32_1 = arith.constant 0 : i32
    return %c0_i32, %c0_i32_0 : i32, i32
  }
  func.func @transform_4(%arg0: i32) -> (i32, i32) {
    %c0_i32 = arith.constant 0 : i32
    %c0_i32_0 = arith.constant 0 : i32
    %c0_i32_1 = arith.constant 0 : i32
    return %c0_i32, %c0_i32_0 : i32, i32
  }
  func.func @transform_5(%arg0: i32) -> (i32, i32) {
    %c0_i32 = arith.constant 0 : i32
    %c0_i32_0 = arith.constant 0 : i32
    %c0_i32_1 = arith.constant 0 : i32
    return %c0_i32, %c0_i32_0 : i32, i32
  }
  func.func @transform_6(%arg0: i32) -> (i32, i32) {
    %c0_i32 = arith.constant 0 : i32
    %c0_i32_0 = arith.constant 0 : i32
    %c0_i32_1 = arith.constant 0 : i32
    return %c0_i32, %c0_i32_0 : i32, i32
  }
  func.func @transform_7(%arg0: i32) -> (i32, i32) {
    %c0_i32 = arith.constant 0 : i32
    %c0_i32_0 = arith.constant 0 : i32
    return %arg0, %c0_i32 : i32, i32
  }
}

</mosaic_0001>

<llo_original>
// kernel: tpu_custom_call.1
$region0: #{tpu_custom_call.1}
  #allocation0 [shape = 'u32[]', space=smem, size = 0x4, offset = 0x4, fixed_abs, tag = 'smem constant byte address 0x4 - core index']
  #allocation1 [shape = 'u32[144,128]{1,0:T(1,128)}', space=vmem, size = 0x12000, scoped, tag = 'internal scratch']
  #allocation2 [shape = 'f32[1,1]{1,0:T(1,128)S(1)}', space=vmem, size = 0x200, scoped, tag = 'scoped memory for tpu_custom_call.1']
  %s0 = inlined_call_operand.hbm [shape: bf16[8,256], index: 0, kind: input, shape index: {}]
  %s1 = inlined_call_operand.hbm [shape: bf16[256,1024], index: 1, kind: input, shape index: {}]
  %s2 = inlined_call_operand.vmem [shape: f32[1,1024], index: 2, kind: input, shape index: {}]
  %s3 = inlined_call_operand.hbm [shape: bf16[1024,256], index: 3, kind: input, shape index: {}]
  %s4 = inlined_call_operand.vmem [shape: f32[1,256], index: 4, kind: input, shape index: {}]
  %s5 = inlined_call_operand.vmem [shape: f32[1,256], index: 5, kind: input, shape index: {}]
  %s6 = inlined_call_operand.<no memory space> [shape: f32[1,1], index: 6, kind: input, shape index: {}]
  %s7 = inlined_call_operand.vmem [shape: f32[8,1], index: 7, kind: output, shape index: {}]
  %s8 = sld [smem:[#allocation0]]
  $region50: #{tpu_custom_call.1} parent=0
    _
  %s10 = ssub.s32 1, %s8
  %s11 = scalar_select 0, %s10, %s8
  %v12 = vstv %s6
  %13 = vst [vmem:[#allocation2] sm:$0x1] %v12
  $region1: #{tpu_custom_call.1} parent=0
    #allocation3 [shape = 'u8[4096]{0}', space=vmem, size = 0x1000, scoped, tag = 'input window, operand 0, single buffered']
    #allocation4 [shape = 's32[1]{0}', space=sflag, size = 0x4, scoped, tag = 'scoped memory for tpu_custom_call.1']
    #allocation5 [shape = 'u8[524288]{0}', space=vmem, size = 0x80000, scoped, tag = 'input window, operand 1, single buffered']
    #allocation6 [shape = 's32[1]{0}', space=sflag, size = 0x4, scoped, tag = 'scoped memory for tpu_custom_call.1']
    #allocation7 [shape = 'u8[524288]{0}', space=vmem, size = 0x80000, scoped, tag = 'input window, operand 3, single buffered']
    %14 = vsyncpa [#allocation4], 0
    %15 = vsyncpa [#allocation6], 0
    // Predicated region
    $region2: #{tpu_custom_call.1} parent=1 // pred_check
      _
    $region3: #{tpu_custom_call.1} parent=1 // pred_check_branch
      %17 = sbr.rel (0) target = $region5
    $region4: #{tpu_custom_call.1} parent=1 // pred_region
      %s19 = ssub.s32 128, 128
      %20 = vsyncadd [#allocation4], %s19
      %s22 = sshll.u32 [#allocation3], 4
      %s23 = int_to_ptr.vmem [resolvable:$true] %s22
      %25 = dma.hbm_to_vmem [thread:$0]  %s0, 128, %s23, [#allocation4]
    $region5: #{tpu_custom_call.1} parent=1 // pred_fallthru
      _
    // Predicated region
    $region6: #{tpu_custom_call.1} parent=1 // pred_check
      _
    $region7: #{tpu_custom_call.1} parent=1 // pred_check_branch
      %27 = sbr.rel (0) target = $region9
    $region8: #{tpu_custom_call.1} parent=1 // pred_region
      %s29 = ssub.s32 16384, 16384
      %30 = vsyncadd [#allocation6], %s29
      %s31 = sshll.u32 [#allocation5], 4
      %s32 = int_to_ptr.vmem [resolvable:$true] %s31
      %37 = dma.hbm_to_vmem [thread:$0]  %s1, 16384, %s32, [#allocation6], 512, 512, 32
    $region9: #{tpu_custom_call.1} parent=1 // pred_fallthru
      _
    // Predicated region
    $region10: #{tpu_custom_call.1} parent=1 // pred_check
      _
    $region11: #{tpu_custom_call.1} parent=1 // pred_check_branch
      %39 = sbr.rel (0) target = $region13
    $region12: #{tpu_custom_call.1} parent=1 // pred_region
      _
    $region13: #{tpu_custom_call.1} parent=1 // pred_fallthru
      _
    // Predicated region
    $region14: #{tpu_custom_call.1} parent=1 // pred_check
      _
    $region15: #{tpu_custom_call.1} parent=1 // pred_check_branch
      %41 = sbr.rel (0) target = $region17
    $region16: #{tpu_custom_call.1} parent=1 // pred_region
      %s43 = ssub.s32 16384, 16384
      %44 = vsyncadd [#allocation6], %s43
      %s45 = sshll.u32 [#allocation7], 4
      %s46 = int_to_ptr.vmem [resolvable:$true] %s45
      %51 = dma.hbm_to_vmem [thread:$0]  %s3, 16384, %s46, [#allocation6], 128, 128, 8
    $region17: #{tpu_custom_call.1} parent=1 // pred_fallthru
      _
    // Predicated region
    $region18: #{tpu_custom_call.1} parent=1 // pred_check
      _
    $region19: #{tpu_custom_call.1} parent=1 // pred_check_branch
      %53 = sbr.rel (0) target = $region21
    $region20: #{tpu_custom_call.1} parent=1 // pred_region
      _
    $region21: #{tpu_custom_call.1} parent=1 // pred_fallthru
      _
    // Predicated region
    $region22: #{tpu_custom_call.1} parent=1 // pred_check
      _
    $region23: #{tpu_custom_call.1} parent=1 // pred_check_branch
      %55 = sbr.rel (0) target = $region25
    $region24: #{tpu_custom_call.1} parent=1 // pred_region
      _
    $region25: #{tpu_custom_call.1} parent=1 // pred_fallthru
      _
    // Predicated region
    $region26: #{tpu_custom_call.1} parent=1 // pred_check
      _
    $region27: #{tpu_custom_call.1} parent=1 // pred_check_branch
      %57 = sbr.rel (0) target = $region29
    $region28: #{tpu_custom_call.1} parent=1 // pred_region
      _
    $region29: #{tpu_custom_call.1} parent=1 // pred_fallthru
      _
    // Predicated region
    $region30: #{tpu_custom_call.1} parent=1 // pred_check
      _
    $region31: #{tpu_custom_call.1} parent=1 // pred_check_branch
      %59 = sbr.rel (0) target = $region33
    $region32: #{tpu_custom_call.1} parent=1 // pred_region
      %60 = dma.done [#allocation4], 128
    $region33: #{tpu_custom_call.1} parent=1 // pred_fallthru
      _
    // Predicated region
    $region34: #{tpu_custom_call.1} parent=1 // pred_check
      _
    $region35: #{tpu_custom_call.1} parent=1 // pred_check_branch
      %62 = sbr.rel (0) target = $region37
    $region36: #{tpu_custom_call.1} parent=1 // pred_region
      %63 = dma.done [#allocation6], 16384
    $region37: #{tpu_custom_call.1} parent=1 // pred_fallthru
      _
    // Predicated region
    $region38: #{tpu_custom_call.1} parent=1 // pred_check
      _
    $region39: #{tpu_custom_call.1} parent=1 // pred_check_branch
      %65 = sbr.rel (0) target = $region41
    $region40: #{tpu_custom_call.1} parent=1 // pred_region
      %66 = dma.done [#allocation6], 16384
    $region41: #{tpu_custom_call.1} parent=1 // pred_fallthru
      _
    %v67 = vld [vmem:[#allocation3] sm:$0xff]
    %v68 = vld [vmem:[#allocation5] sm:$0xff]
    %v69 = vld [vmem:[#allocation5 + $0x8] sm:$0xff]
    %v70 = vld [vmem:[#allocation5 + $0x10] sm:$0xff]
    %v71 = vld [vmem:[#allocation5 + $0x18] sm:$0xff]
    %v72 = vld [vmem:[#allocation5 + $0x20] sm:$0xff]
    %v73 = vld [vmem:[#allocation5 + $0x28] sm:$0xff]
    %v74 = vld [vmem:[#allocation5 + $0x30] sm:$0xff]
    %v75 = vld [vmem:[#allocation5 + $0x38] sm:$0xff]
    %v76 = vld [vmem:[#allocation5 + $0x40] sm:$0xff]
    %v77 = vld [vmem:[#allocation5 + $0x48] sm:$0xff]
    %v78 = vld [vmem:[#allocation5 + $0x50] sm:$0xff]
    %v79 = vld [vmem:[#allocation5 + $0x58] sm:$0xff]
    %v80 = vld [vmem:[#allocation5 + $0x60] sm:$0xff]
    %v81 = vld [vmem:[#allocation5 + $0x68] sm:$0xff]
    %v82 = vld [vmem:[#allocation5 + $0x70] sm:$0xff]
    %v83 = vld [vmem:[#allocation5 + $0x78] sm:$0xff]
    %v84 = vld [vmem:[#allocation5 + $0x80] sm:$0xff]
    %v85 = vld [vmem:[#allocation5 + $0x88] sm:$0xff]
    %v86 = vld [vmem:[#allocation5 + $0x90] sm:$0xff]
    %v87 = vld [vmem:[#allocation5 + $0x98] sm:$0xff]
    %v88 = vld [vmem:[#allocation5 + $0xa0] sm:$0xff]
    %v89 = vld [vmem:[#allocation5 + $0xa8] sm:$0xff]
    %v90 = vld [vmem:[#allocation5 + $0xb0] sm:$0xff]
    %v91 = vld [vmem:[#allocation5 + $0xb8] sm:$0xff]
    %v92 = vld [vmem:[#allocation5 + $0xc0] sm:$0xff]
    %v93 = vld [vmem:[#allocation5 + $0xc8] sm:$0xff]
    %v94 = vld [vmem:[#allocation5 + $0xd0] sm:$0xff]
    %v95 = vld [vmem:[#allocation5 + $0xd8] sm:$0xff]
    %v96 = vld [vmem:[#allocation5 + $0xe0] sm:$0xff]
    %v97 = vld [vmem:[#allocation5 + $0xe8] sm:$0xff]
    %v98 = vld [vmem:[#allocation5 + $0xf0] sm:$0xff]
    %v99 = vld [vmem:[#allocation5 + $0xf8] sm:$0xff]
    %v100 = vld [vmem:[#allocation5 + $0x100] sm:$0xff]
    %v101 = vld [vmem:[#allocation5 + $0x108] sm:$0xff]
    %v102 = vld [vmem:[#allocation5 + $0x110] sm:$0xff]
    %v103 = vld [vmem:[#allocation5 + $0x118] sm:$0xff]
    %v104 = vld [vmem:[#allocation5 + $0x120] sm:$0xff]
    %v105 = vld [vmem:[#allocation5 + $0x128] sm:$0xff]
    %v106 = vld [vmem:[#allocation5 + $0x130] sm:$0xff]
    %v107 = vld [vmem:[#allocation5 + $0x138] sm:$0xff]
    %v108 = vld [vmem:[#allocation5 + $0x140] sm:$0xff]
    %v109 = vld [vmem:[#allocation5 + $0x148] sm:$0xff]
    %v110 = vld [vmem:[#allocation5 + $0x150] sm:$0xff]
    %v111 = vld [vmem:[#allocation5 + $0x158] sm:$0xff]
    %v112 = vld [vmem:[#allocation5 + $0x160] sm:$0xff]
    %v113 = vld [vmem:[#allocation5 + $0x168] sm:$0xff]
    %v114 = vld [vmem:[#allocation5 + $0x170] sm:$0xff]
    %v115 = vld [vmem:[#allocation5 + $0x178] sm:$0xff]
    %v116 = vld [vmem:[#allocation5 + $0x180] sm:$0xff]
    %v117 = vld [vmem:[#allocation5 + $0x188] sm:$0xff]
    %v118 = vld [vmem:[#allocation5 + $0x190] sm:$0xff]
    %v119 = vld [vmem:[#allocation5 + $0x198] sm:$0xff]
    %v120 = vld [vmem:[#allocation5 + $0x1a0] sm:$0xff]
    %v121 = vld [vmem:[#allocation5 + $0x1a8] sm:$0xff]
    %v122 = vld [vmem:[#allocation5 + $0x1b0] sm:$0xff]
    %v123 = vld [vmem:[#allocation5 + $0x1b8] sm:$0xff]
    %v124 = vld [vmem:[#allocation5 + $0x1c0] sm:$0xff]
    %v125 = vld [vmem:[#allocation5 + $0x1c8] sm:$0xff]
    %v126 = vld [vmem:[#allocation5 + $0x1d0] sm:$0xff]
    %v127 = vld [vmem:[#allocation5 + $0x1d8] sm:$0xff]
    %v128 = vld [vmem:[#allocation5 + $0x1e0] sm:$0xff]
    %v129 = vld [vmem:[#allocation5 + $0x1e8] sm:$0xff]
    %v130 = vld [vmem:[#allocation5 + $0x1f0] sm:$0xff]
    %v131 = vld [vmem:[#allocation5 + $0x1f8] sm:$0xff]
    %v132 = vld [vmem:[#allocation5 + $0x200] sm:$0xff]
    %v133 = vld [vmem:[#allocation5 + $0x208] sm:$0xff]
    %v134 = vld [vmem:[#allocation5 + $0x210] sm:$0xff]
    %v135 = vld [vmem:[#allocation5 + $0x218] sm:$0xff]
    %v136 = vld [vmem:[#allocation5 + $0x220] sm:$0xff]
    %v137 = vld [vmem:[#allocation5 + $0x228] sm:$0xff]
    %v138 = vld [vmem:[#allocation5 + $0x230] sm:$0xff]
    %v139 = vld [vmem:[#allocation5 + $0x238] sm:$0xff]
    %v140 = vld [vmem:[#allocation5 + $0x240] sm:$0xff]
    %v141 = vld [vmem:[#allocation5 + $0x248] sm:$0xff]
    %v142 = vld [vmem:[#allocation5 + $0x250] sm:$0xff]
    %v143 = vld [vmem:[#allocation5 + $0x258] sm:$0xff]
    %v144 = vld [vmem:[#allocation5 + $0x260] sm:$0xff]
    %v145 = vld [vmem:[#allocation5 + $0x268] sm:$0xff]
    %v146 = vld [vmem:[#allocation5 + $0x270] sm:$0xff]
    %v147 = vld [vmem:[#allocation5 + $0x278] sm:$0xff]
    %v148 = vld [vmem:[#allocation5 + $0x280] sm:$0xff]
    %v149 = vld [vmem:[#allocation5 + $0x288] sm:$0xff]
    %v150 = vld [vmem:[#allocation5 + $0x290] sm:$0xff]
    %v151 = vld [vmem:[#allocation5 + $0x298] sm:$0xff]
    %v152 = vld [vmem:[#allocation5 + $0x2a0] sm:$0xff]
    %v153 = vld [vmem:[#allocation5 + $0x2a8] sm:$0xff]
    %v154 = vld [vmem:[#allocation5 + $0x2b0] sm:$0xff]
    %v155 = vld [vmem:[#allocation5 + $0x2b8] sm:$0xff]
    %v156 = vld [vmem:[#allocation5 + $0x2c0] sm:$0xff]
    %v157 = vld [vmem:[#allocation5 + $0x2c8] sm:$0xff]
    %v158 = vld [vmem:[#allocation5 + $0x2d0] sm:$0xff]
    %v159 = vld [vmem:[#allocation5 + $0x2d8] sm:$0xff]
    %v160 = vld [vmem:[#allocation5 + $0x2e0] sm:$0xff]
    %v161 = vld [vmem:[#allocation5 + $0x2e8] sm:$0xff]
    %v162 = vld [vmem:[#allocation5 + $0x2f0] sm:$0xff]
    %v163 = vld [vmem:[#allocation5 + $0x2f8] sm:$0xff]
    %v164 = vld [vmem:[#allocation5 + $0x300] sm:$0xff]
    %v165 = vld [vmem:[#allocation5 + $0x308] sm:$0xff]
    %v166 = vld [vmem:[#allocation5 + $0x310] sm:$0xff]
    %v167 = vld [vmem:[#allocation5 + $0x318] sm:$0xff]
    %v168 = vld [vmem:[#allocation5 + $0x320] sm:$0xff]
    %v169 = vld [vmem:[#allocation5 + $0x328] sm:$0xff]
    %v170 = vld [vmem:[#allocation5 + $0x330] sm:$0xff]
    %v171 = vld [vmem:[#allocation5 + $0x338] sm:$0xff]
    %v172 = vld [vmem:[#allocation5 + $0x340] sm:$0xff]
    %v173 = vld [vmem:[#allocation5 + $0x348] sm:$0xff]
    %v174 = vld [vmem:[#allocation5 + $0x350] sm:$0xff]
    %v175 = vld [vmem:[#allocation5 + $0x358] sm:$0xff]
    %v176 = vld [vmem:[#allocation5 + $0x360] sm:$0xff]
    %v177 = vld [vmem:[#allocation5 + $0x368] sm:$0xff]
    %v178 = vld [vmem:[#allocation5 + $0x370] sm:$0xff]
    %v179 = vld [vmem:[#allocation5 + $0x378] sm:$0xff]
    %v180 = vld [vmem:[#allocation5 + $0x380] sm:$0xff]
    %v181 = vld [vmem:[#allocation5 + $0x388] sm:$0xff]
    %v182 = vld [vmem:[#allocation5 + $0x390] sm:$0xff]
    %v183 = vld [vmem:[#allocation5 + $0x398] sm:$0xff]
    %v184 = vld [vmem:[#allocation5 + $0x3a0] sm:$0xff]
    %v185 = vld [vmem:[#allocation5 + $0x3a8] sm:$0xff]
    %v186 = vld [vmem:[#allocation5 + $0x3b0] sm:$0xff]
    %v187 = vld [vmem:[#allocation5 + $0x3b8] sm:$0xff]
    %v188 = vld [vmem:[#allocation5 + $0x3c0] sm:$0xff]
    %v189 = vld [vmem:[#allocation5 + $0x3c8] sm:$0xff]
    %v190 = vld [vmem:[#allocation5 + $0x3d0] sm:$0xff]
    %v191 = vld [vmem:[#allocation5 + $0x3d8] sm:$0xff]
    %v192 = vld [vmem:[#allocation5 + $0x3e0] sm:$0xff]
    %v193 = vld [vmem:[#allocation5 + $0x3e8] sm:$0xff]
    %v194 = vld [vmem:[#allocation5 + $0x3f0] sm:$0xff]
    %v195 = vld [vmem:[#allocation5 + $0x3f8] sm:$0xff]
    %v196 = vld [vmem:[%s2] sm:$0xff]
    %v198 = vlaneseq
    %v199 = vshrl.u32 %v198, 7
    %v200 = vsub.s32 0, %v199
    %v201 = vrot.slane %v196, %v200
    %v202 = vlaneseq
    %v203 = vshrl.u32 %v202, 7
    %v204 = vsub.s32 1, %v203
    %v205 = vrot.slane %v196, %v204
    %v206 = vlaneseq
    %v207 = vshrl.u32 %v206, 7
    %v208 = vsub.s32 2, %v207
    %v209 = vrot.slane %v196, %v208
    %v210 = vlaneseq
    %v211 = vshrl.u32 %v210, 7
    %v212 = vsub.s32 3, %v211
    %v213 = vrot.slane %v196, %v212
    %v214 = vlaneseq
    %v215 = vshrl.u32 %v214, 7
    %v216 = vsub.s32 4, %v215
    %v217 = vrot.slane %v196, %v216
    %v218 = vlaneseq
    %v219 = vshrl.u32 %v218, 7
    %v220 = vsub.s32 5, %v219
    %v221 = vrot.slane %v196, %v220
    %v222 = vlaneseq
    %v223 = vshrl.u32 %v222, 7
    %v224 = vsub.s32 6, %v223
    %v225 = vrot.slane %v196, %v224
    %v226 = vlaneseq
    %v227 = vshrl.u32 %v226, 7
    %v228 = vsub.s32 7, %v227
    %v229 = vrot.slane %v196, %v228
    %v239 = vunpack.c.l.b16 %v67
    %v240 = vunpack.c.h.b16 %v67
    %v241 = vpack.c.b16 %v239, %v239
    %v242 = vpack.c.b16 %v240, %v240
    %v373 = vunpack.c.l.b16 %v68
    %v374 = vunpack.c.h.b16 %v68
    %v375 = vunpack.c.l.b16 %v69
    %v376 = vunpack.c.h.b16 %v69
    %v377 = vunpack.c.l.b16 %v70
    %v378 = vunpack.c.h.b16 %v70
    %v379 = vunpack.c.l.b16 %v71
    %v380 = vunpack.c.h.b16 %v71
    %v381 = vunpack.c.l.b16 %v72
    %v382 = vunpack.c.h.b16 %v72
    %v383 = vunpack.c.l.b16 %v73
    %v384 = vunpack.c.h.b16 %v73
    %v385 = vunpack.c.l.b16 %v74
    %v386 = vunpack.c.h.b16 %v74
    %v387 = vunpack.c.l.b16 %v75
    %v388 = vunpack.c.h.b16 %v75
    %v389 = vunpack.c.l.b16 %v76
    %v390 = vunpack.c.h.b16 %v76
    %v391 = vunpack.c.l.b16 %v77
    %v392 = vunpack.c.h.b16 %v77
    %v393 = vunpack.c.l.b16 %v78
    %v394 = vunpack.c.h.b16 %v78
    %v395 = vunpack.c.l.b16 %v79
    %v396 = vunpack.c.h.b16 %v79
    %v397 = vunpack.c.l.b16 %v80
    %v398 = vunpack.c.h.b16 %v80
    %v399 = vunpack.c.l.b16 %v81
    %v400 = vunpack.c.h.b16 %v81
    %v401 = vunpack.c.l.b16 %v82
    %v402 = vunpack.c.h.b16 %v82
    %v403 = vunpack.c.l.b16 %v83
    %v404 = vunpack.c.h.b16 %v83
    %v405 = vunpack.c.l.b16 %v84
    %v406 = vunpack.c.h.b16 %v84
    %v407 = vunpack.c.l.b16 %v85
    %v408 = vunpack.c.h.b16 %v85
    %v409 = vunpack.c.l.b16 %v86
    %v410 = vunpack.c.h.b16 %v86
    %v411 = vunpack.c.l.b16 %v87
    %v412 = vunpack.c.h.b16 %v87
    %v413 = vunpack.c.l.b16 %v88
    %v414 = vunpack.c.h.b16 %v88
    %v415 = vunpack.c.l.b16 %v89
    %v416 = vunpack.c.h.b16 %v89
    %v417 = vunpack.c.l.b16 %v90
    %v418 = vunpack.c.h.b16 %v90
    %v419 = vunpack.c.l.b16 %v91
    %v420 = vunpack.c.h.b16 %v91
    %v421 = vunpack.c.l.b16 %v92
    %v422 = vunpack.c.h.b16 %v92
    %v423 = vunpack.c.l.b16 %v93
    %v424 = vunpack.c.h.b16 %v93
    %v425 = vunpack.c.l.b16 %v94
    %v426 = vunpack.c.h.b16 %v94
    %v427 = vunpack.c.l.b16 %v95
    %v428 = vunpack.c.h.b16 %v95
    %v429 = vunpack.c.l.b16 %v96
    %v430 = vunpack.c.h.b16 %v96
    %v431 = vunpack.c.l.b16 %v97
    %v432 = vunpack.c.h.b16 %v97
    %v433 = vunpack.c.l.b16 %v98
    %v434 = vunpack.c.h.b16 %v98
    %v435 = vunpack.c.l.b16 %v99
    %v436 = vunpack.c.h.b16 %v99
    %v437 = vunpack.c.l.b16 %v100
    %v438 = vunpack.c.h.b16 %v100
    %v439 = vunpack.c.l.b16 %v101
    %v440 = vunpack.c.h.b16 %v101
    %v441 = vunpack.c.l.b16 %v102
    %v442 = vunpack.c.h.b16 %v102
    %v443 = vunpack.c.l.b16 %v103
    %v444 = vunpack.c.h.b16 %v103
    %v445 = vunpack.c.l.b16 %v104
    %v446 = vunpack.c.h.b16 %v104
    %v447 = vunpack.c.l.b16 %v105
    %v448 = vunpack.c.h.b16 %v105
    %v449 = vunpack.c.l.b16 %v106
    %v450 = vunpack.c.h.b16 %v106
    %v451 = vunpack.c.l.b16 %v107
    %v452 = vunpack.c.h.b16 %v107
    %v453 = vunpack.c.l.b16 %v108
    %v454 = vunpack.c.h.b16 %v108
    %v455 = vunpack.c.l.b16 %v109
    %v456 = vunpack.c.h.b16 %v109
    %v457 = vunpack.c.l.b16 %v110
    %v458 = vunpack.c.h.b16 %v110
    %v459 = vunpack.c.l.b16 %v111
    %v460 = vunpack.c.h.b16 %v111
    %v461 = vunpack.c.l.b16 %v112
    %v462 = vunpack.c.h.b16 %v112
    %v463 = vunpack.c.l.b16 %v113
    %v464 = vunpack.c.h.b16 %v113
    %v465 = vunpack.c.l.b16 %v114
    %v466 = vunpack.c.h.b16 %v114
    %v467 = vunpack.c.l.b16 %v115
    %v468 = vunpack.c.h.b16 %v115
    %v469 = vunpack.c.l.b16 %v116
    %v470 = vunpack.c.h.b16 %v116
    %v471 = vunpack.c.l.b16 %v117
    %v472 = vunpack.c.h.b16 %v117
    %v473 = vunpack.c.l.b16 %v118
    %v474 = vunpack.c.h.b16 %v118
    %v475 = vunpack.c.l.b16 %v119
    %v476 = vunpack.c.h.b16 %v119
    %v477 = vunpack.c.l.b16 %v120
    %v478 = vunpack.c.h.b16 %v120
    %v479 = vunpack.c.l.b16 %v121
    %v480 = vunpack.c.h.b16 %v121
    %v481 = vunpack.c.l.b16 %v122
    %v482 = vunpack.c.h.b16 %v122
    %v483 = vunpack.c.l.b16 %v123
    %v484 = vunpack.c.h.b16 %v123
    %v485 = vunpack.c.l.b16 %v124
    %v486 = vunpack.c.h.b16 %v124
    %v487 = vunpack.c.l.b16 %v125
    %v488 = vunpack.c.h.b16 %v125
    %v489 = vunpack.c.l.b16 %v126
    %v490 = vunpack.c.h.b16 %v126
    %v491 = vunpack.c.l.b16 %v127
    %v492 = vunpack.c.h.b16 %v127
    %v493 = vunpack.c.l.b16 %v128
    %v494 = vunpack.c.h.b16 %v128
    %v495 = vunpack.c.l.b16 %v129
    %v496 = vunpack.c.h.b16 %v129
    %v497 = vunpack.c.l.b16 %v130
    %v498 = vunpack.c.h.b16 %v130
    %v499 = vunpack.c.l.b16 %v131
    %v500 = vunpack.c.h.b16 %v131
    %v501 = vunpack.c.l.b16 %v132
    %v502 = vunpack.c.h.b16 %v132
    %v503 = vunpack.c.l.b16 %v133
    %v504 = vunpack.c.h.b16 %v133
    %v505 = vunpack.c.l.b16 %v134
    %v506 = vunpack.c.h.b16 %v134
    %v507 = vunpack.c.l.b16 %v135
    %v508 = vunpack.c.h.b16 %v135
    %v509 = vunpack.c.l.b16 %v136
    %v510 = vunpack.c.h.b16 %v136
    %v511 = vunpack.c.l.b16 %v137
    %v512 = vunpack.c.h.b16 %v137
    %v513 = vunpack.c.l.b16 %v138
    %v514 = vunpack.c.h.b16 %v138
    %v515 = vunpack.c.l.b16 %v139
    %v516 = vunpack.c.h.b16 %v139
    %v517 = vunpack.c.l.b16 %v140
    %v518 = vunpack.c.h.b16 %v140
    %v519 = vunpack.c.l.b16 %v141
    %v520 = vunpack.c.h.b16 %v141
    %v521 = vunpack.c.l.b16 %v142
    %v522 = vunpack.c.h.b16 %v142
    %v523 = vunpack.c.l.b16 %v143
    %v524 = vunpack.c.h.b16 %v143
    %v525 = vunpack.c.l.b16 %v144
    %v526 = vunpack.c.h.b16 %v144
    %v527 = vunpack.c.l.b16 %v145
    %v528 = vunpack.c.h.b16 %v145
    %v529 = vunpack.c.l.b16 %v146
    %v530 = vunpack.c.h.b16 %v146
    %v531 = vunpack.c.l.b16 %v147
    %v532 = vunpack.c.h.b16 %v147
    %v533 = vunpack.c.l.b16 %v148
    %v534 = vunpack.c.h.b16 %v148
    %v535 = vunpack.c.l.b16 %v149
    %v536 = vunpack.c.h.b16 %v149
    %v537 = vunpack.c.l.b16 %v150
    %v538 = vunpack.c.h.b16 %v150
    %v539 = vunpack.c.l.b16 %v151
    %v540 = vunpack.c.h.b16 %v151
    %v541 = vunpack.c.l.b16 %v152
    %v542 = vunpack.c.h.b16 %v152
    %v543 = vunpack.c.l.b16 %v153
    %v544 = vunpack.c.h.b16 %v153
    %v545 = vunpack.c.l.b16 %v154
    %v546 = vunpack.c.h.b16 %v154
    %v547 = vunpack.c.l.b16 %v155
    %v548 = vunpack.c.h.b16 %v155
    %v549 = vunpack.c.l.b16 %v156
    %v550 = vunpack.c.h.b16 %v156
    %v551 = vunpack.c.l.b16 %v157
    %v552 = vunpack.c.h.b16 %v157
    %v553 = vunpack.c.l.b16 %v158
    %v554 = vunpack.c.h.b16 %v158
    %v555 = vunpack.c.l.b16 %v159
    %v556 = vunpack.c.h.b16 %v159
    %v557 = vunpack.c.l.b16 %v160
    %v558 = vunpack.c.h.b16 %v160
    %v559 = vunpack.c.l.b16 %v161
    %v560 = vunpack.c.h.b16 %v161
    %v561 = vunpack.c.l.b16 %v162
    %v562 = vunpack.c.h.b16 %v162
    %v563 = vunpack.c.l.b16 %v163
    %v564 = vunpack.c.h.b16 %v163
    %v565 = vunpack.c.l.b16 %v164
    %v566 = vunpack.c.h.b16 %v164
    %v567 = vunpack.c.l.b16 %v165
    %v568 = vunpack.c.h.b16 %v165
    %v569 = vunpack.c.l.b16 %v166
    %v570 = vunpack.c.h.b16 %v166
    %v571 = vunpack.c.l.b16 %v167
    %v572 = vunpack.c.h.b16 %v167
    %v573 = vunpack.c.l.b16 %v168
    %v574 = vunpack.c.h.b16 %v168
    %v575 = vunpack.c.l.b16 %v169
    %v576 = vunpack.c.h.b16 %v169
    %v577 = vunpack.c.l.b16 %v170
    %v578 = vunpack.c.h.b16 %v170
    %v579 = vunpack.c.l.b16 %v171
    %v580 = vunpack.c.h.b16 %v171
    %v581 = vunpack.c.l.b16 %v172
    %v582 = vunpack.c.h.b16 %v172
    %v583 = vunpack.c.l.b16 %v173
    %v584 = vunpack.c.h.b16 %v173
    %v585 = vunpack.c.l.b16 %v174
    %v586 = vunpack.c.h.b16 %v174
    %v587 = vunpack.c.l.b16 %v175
    %v588 = vunpack.c.h.b16 %v175
    %v589 = vunpack.c.l.b16 %v176
    %v590 = vunpack.c.h.b16 %v176
    %v591 = vunpack.c.l.b16 %v177
    %v592 = vunpack.c.h.b16 %v177
    %v593 = vunpack.c.l.b16 %v178
    %v594 = vunpack.c.h.b16 %v178
    %v595 = vunpack.c.l.b16 %v179
    %v596 = vunpack.c.h.b16 %v179
    %v597 = vunpack.c.l.b16 %v180
    %v598 = vunpack.c.h.b16 %v180
    %v599 = vunpack.c.l.b16 %v181
    %v600 = vunpack.c.h.b16 %v181
    %v601 = vunpack.c.l.b16 %v182
    %v602 = vunpack.c.h.b16 %v182
    %v603 = vunpack.c.l.b16 %v183
    %v604 = vunpack.c.h.b16 %v183
    %v605 = vunpack.c.l.b16 %v184
    %v606 = vunpack.c.h.b16 %v184
    %v607 = vunpack.c.l.b16 %v185
    %v608 = vunpack.c.h.b16 %v185
    %v609 = vunpack.c.l.b16 %v186
    %v610 = vunpack.c.h.b16 %v186
    %v611 = vunpack.c.l.b16 %v187
    %v612 = vunpack.c.h.b16 %v187
    %v613 = vunpack.c.l.b16 %v188
    %v614 = vunpack.c.h.b16 %v188
    %v615 = vunpack.c.l.b16 %v189
    %v616 = vunpack.c.h.b16 %v189
    %v617 = vunpack.c.l.b16 %v190
    %v618 = vunpack.c.h.b16 %v190
    %v619 = vunpack.c.l.b16 %v191
    %v620 = vunpack.c.h.b16 %v191
    %v621 = vunpack.c.l.b16 %v192
    %v622 = vunpack.c.h.b16 %v192
    %v623 = vunpack.c.l.b16 %v193
    %v624 = vunpack.c.h.b16 %v193
    %v625 = vunpack.c.l.b16 %v194
    %v626 = vunpack.c.h.b16 %v194
    %v627 = vunpack.c.l.b16 %v195
    %v628 = vunpack.c.h.b16 %v195
    %v629 = vpack.c.b16 %v381, %v373
    %v630 = vpack.c.b16 %v382, %v374
    %v631 = vpack.c.b16 %v383, %v375
    %v632 = vpack.c.b16 %v384, %v376
    %v633 = vpack.c.b16 %v385, %v377
    %v634 = vpack.c.b16 %v386, %v378
    %v635 = vpack.c.b16 %v387, %v379
    %v636 = vpack.c.b16 %v388, %v380
    %v637 = vpack.c.b16 %v397, %v389
    %v638 = vpack.c.b16 %v398, %v390
    %v639 = vpack.c.b16 %v399, %v391
    %v640 = vpack.c.b16 %v400, %v392
    %v641 = vpack.c.b16 %v401, %v393
    %v642 = vpack.c.b16 %v402, %v394
    %v643 = vpack.c.b16 %v403, %v395
    %v644 = vpack.c.b16 %v404, %v396
    %v645 = vpack.c.b16 %v413, %v405
    %v646 = vpack.c.b16 %v414, %v406
    %v647 = vpack.c.b16 %v415, %v407
    %v648 = vpack.c.b16 %v416, %v408
    %v649 = vpack.c.b16 %v417, %v409
    %v650 = vpack.c.b16 %v418, %v410
    %v651 = vpack.c.b16 %v419, %v411
    %v652 = vpack.c.b16 %v420, %v412
    %v653 = vpack.c.b16 %v429, %v421
    %v654 = vpack.c.b16 %v430, %v422
    %v655 = vpack.c.b16 %v431, %v423
    %v656 = vpack.c.b16 %v432, %v424
    %v657 = vpack.c.b16 %v433, %v425
    %v658 = vpack.c.b16 %v434, %v426
    %v659 = vpack.c.b16 %v435, %v427
    %v660 = vpack.c.b16 %v436, %v428
    %v661 = vpack.c.b16 %v445, %v437
    %v662 = vpack.c.b16 %v446, %v438
    %v663 = vpack.c.b16 %v447, %v439
    %v664 = vpack.c.b16 %v448, %v440
    %v665 = vpack.c.b16 %v449, %v441
    %v666 = vpack.c.b16 %v450, %v442
    %v667 = vpack.c.b16 %v451, %v443
    %v668 = vpack.c.b16 %v452, %v444
    %v669 = vpack.c.b16 %v461, %v453
    %v670 = vpack.c.b16 %v462, %v454
    %v671 = vpack.c.b16 %v463, %v455
    %v672 = vpack.c.b16 %v464, %v456
    %v673 = vpack.c.b16 %v465, %v457
    %v674 = vpack.c.b16 %v466, %v458
    %v675 = vpack.c.b16 %v467, %v459
    %v676 = vpack.c.b16 %v468, %v460
    %v677 = vpack.c.b16 %v477, %v469
    %v678 = vpack.c.b16 %v478, %v470
    %v679 = vpack.c.b16 %v479, %v471
    %v680 = vpack.c.b16 %v480, %v472
    %v681 = vpack.c.b16 %v481, %v473
    %v682 = vpack.c.b16 %v482, %v474
    %v683 = vpack.c.b16 %v483, %v475
    %v684 = vpack.c.b16 %v484, %v476
    %v685 = vpack.c.b16 %v493, %v485
    %v686 = vpack.c.b16 %v494, %v486
    %v687 = vpack.c.b16 %v495, %v487
    %v688 = vpack.c.b16 %v496, %v488
    %v689 = vpack.c.b16 %v497, %v489
    %v690 = vpack.c.b16 %v498, %v490
    %v691 = vpack.c.b16 %v499, %v491
    %v692 = vpack.c.b16 %v500, %v492
    %v693 = vpack.c.b16 %v509, %v501
    %v694 = vpack.c.b16 %v510, %v502
    %v695 = vpack.c.b16 %v511, %v503
    %v696 = vpack.c.b16 %v512, %v504
    %v697 = vpack.c.b16 %v513, %v505
    %v698 = vpack.c.b16 %v514, %v506
    %v699 = vpack.c.b16 %v515, %v507
    %v700 = vpack.c.b16 %v516, %v508
    %v701 = vpack.c.b16 %v525, %v517
    %v702 = vpack.c.b16 %v526, %v518
    %v703 = vpack.c.b16 %v527, %v519
    %v704 = vpack.c.b16 %v528, %v520
    %v705 = vpack.c.b16 %v529, %v521
    %v706 = vpack.c.b16 %v530, %v522
    %v707 = vpack.c.b16 %v531, %v523
    %v708 = vpack.c.b16 %v532, %v524
    %v709 = vpack.c.b16 %v541, %v533
    %v710 = vpack.c.b16 %v542, %v534
    %v711 = vpack.c.b16 %v543, %v535
    %v712 = vpack.c.b16 %v544, %v536
    %v713 = vpack.c.b16 %v545, %v537
    %v714 = vpack.c.b16 %v546, %v538
    %v715 = vpack.c.b16 %v547, %v539
    %v716 = vpack.c.b16 %v548, %v540
    %v717 = vpack.c.b16 %v557, %v549
    %v718 = vpack.c.b16 %v558, %v550
    %v719 = vpack.c.b16 %v559, %v551
    %v720 = vpack.c.b16 %v560, %v552
    %v721 = vpack.c.b16 %v561, %v553
    %v722 = vpack.c.b16 %v562, %v554
    %v723 = vpack.c.b16 %v563, %v555
    %v724 = vpack.c.b16 %v564, %v556
    %v725 = vpack.c.b16 %v573, %v565
    %v726 = vpack.c.b16 %v574, %v566
    %v727 = vpack.c.b16 %v575, %v567
    %v728 = vpack.c.b16 %v576, %v568
    %v729 = vpack.c.b16 %v577, %v569
    %v730 = vpack.c.b16 %v578, %v570
    %v731 = vpack.c.b16 %v579, %v571
    %v732 = vpack.c.b16 %v580, %v572
    %v733 = vpack.c.b16 %v589, %v581
    %v734 = vpack.c.b16 %v590, %v582
    %v735 = vpack.c.b16 %v591, %v583
    %v736 = vpack.c.b16 %v592, %v584
    %v737 = vpack.c.b16 %v593, %v585
    %v738 = vpack.c.b16 %v594, %v586
    %v739 = vpack.c.b16 %v595, %v587
    %v740 = vpack.c.b16 %v596, %v588
    %v741 = vpack.c.b16 %v605, %v597
    %v742 = vpack.c.b16 %v606, %v598
    %v743 = vpack.c.b16 %v607, %v599
    %v744 = vpack.c.b16 %v608, %v600
    %v745 = vpack.c.b16 %v609, %v601
    %v746 = vpack.c.b16 %v610, %v602
    %v747 = vpack.c.b16 %v611, %v603
    %v748 = vpack.c.b16 %v612, %v604
    %v749 = vpack.c.b16 %v621, %v613
    %v750 = vpack.c.b16 %v622, %v614
    %v751 = vpack.c.b16 %v623, %v615
    %v752 = vpack.c.b16 %v624, %v616
    %v753 = vpack.c.b16 %v625, %v617
    %v754 = vpack.c.b16 %v626, %v618
    %v755 = vpack.c.b16 %v627, %v619
    %v756 = vpack.c.b16 %v628, %v620
    %885 = vmatprep.subr.bf16.mxu0 %v630
    %886 = vmatpush1.bf16.msra.mxu0 %v629
    %887 = vmatprep.subr.bf16.mxu0 %v638
    %888 = vmatpush1.bf16.msra.mxu0 %v637
    %889 = vmatprep.subr.bf16.mxu0 %v646
    %890 = vmatpush1.bf16.msra.mxu0 %v645
    %891 = vmatprep.subr.bf16.mxu0 %v654
    %892 = vmatpush1.bf16.msra.mxu0 %v653
    %893 = vmatprep.subr.bf16.mxu0 %v662
    %894 = vmatpush1.bf16.msra.mxu0 %v661
    %895 = vmatprep.subr.bf16.mxu0 %v670
    %896 = vmatpush1.bf16.msra.mxu0 %v669
    %897 = vmatprep.subr.bf16.mxu0 %v678
    %898 = vmatpush1.bf16.msra.mxu0 %v677
    %899 = vmatprep.subr.bf16.mxu0 %v686
    %900 = vmatpush1.bf16.msra.mxu0 %v685
    %901 = vmatprep.subr.bf16.mxu0 %v694
    %902 = vmatpush1.bf16.msra.mxu0 %v693
    %903 = vmatprep.subr.bf16.mxu0 %v702
    %904 = vmatpush1.bf16.msra.mxu0 %v701
    %905 = vmatprep.subr.bf16.mxu0 %v710
    %906 = vmatpush1.bf16.msra.mxu0 %v709
    %907 = vmatprep.subr.bf16.mxu0 %v718
    %908 = vmatpush1.bf16.msra.mxu0 %v717
    %909 = vmatprep.subr.bf16.mxu0 %v726
    %910 = vmatpush1.bf16.msra.mxu0 %v725
    %911 = vmatprep.subr.bf16.mxu0 %v734
    %912 = vmatpush1.bf16.msra.mxu0 %v733
    %913 = vmatprep.subr.bf16.mxu0 %v742
    %914 = vmatpush1.bf16.msra.mxu0 %v741
    %915 = vmatprep.subr.bf16.mxu0 %v750
    %916 = vmatpush1.bf16.msra.mxu0 %v749
    %917 = vmatprep.mubr.bf16.mxu0 %v242
    %918 = vmatmul.mubr.bf16.gmra.mrb[0].mxu0 %v241
    %v919 = vpop.f32.mrb[0].mxu0
    %v920 = vadd.f32 %v201, %v919
    %v921 = vpop.f32.mrb[0].mxu0
    %v922 = vadd.f32 %v205, %v921
    %v923 = vpop.f32.mrb[0].mxu0
    %v924 = vpop.f32.mrb[0].mxu0
    %925 = vdwg.mxu0
    %926 = vmatprep.subr.bf16.mxu0 %v632
    %927 = vmatpush1.bf16.msra.mxu0 %v631
    %928 = vmatprep.subr.bf16.mxu0 %v640
    %929 = vmatpush1.bf16.msra.mxu0 %v639
    %930 = vmatprep.subr.bf16.mxu0 %v648
    %931 = vmatpush1.bf16.msra.mxu0 %v647
    %932 = vmatprep.subr.bf16.mxu0 %v656
    %933 = vmatpush1.bf16.msra.mxu0 %v655
    %934 = vmatprep.subr.bf16.mxu0 %v664
    %935 = vmatpush1.bf16.msra.mxu0 %v663
    %936 = vmatprep.subr.bf16.mxu0 %v672
    %937 = vmatpush1.bf16.msra.mxu0 %v671
    %938 = vmatprep.subr.bf16.mxu0 %v680
    %939 = vmatpush1.bf16.msra.mxu0 %v679
    %940 = vmatprep.subr.bf16.mxu0 %v688
    %941 = vmatpush1.bf16.msra.mxu0 %v687
    %942 = vmatprep.subr.bf16.mxu0 %v696
    %943 = vmatpush1.bf16.msra.mxu0 %v695
    %944 = vmatprep.subr.bf16.mxu0 %v704
    %945 = vmatpush1.bf16.msra.mxu0 %v703
    %946 = vmatprep.subr.bf16.mxu0 %v712
    %947 = vmatpush1.bf16.msra.mxu0 %v711
    %948 = vmatprep.subr.bf16.mxu0 %v720
    %949 = vmatpush1.bf16.msra.mxu0 %v719
    %950 = vmatprep.subr.bf16.mxu0 %v728
    %951 = vmatpush1.bf16.msra.mxu0 %v727
    %952 = vmatprep.subr.bf16.mxu0 %v736
    %953 = vmatpush1.bf16.msra.mxu0 %v735
    %954 = vmatprep.subr.bf16.mxu0 %v744
    %955 = vmatpush1.bf16.msra.mxu0 %v743
    %956 = vmatprep.subr.bf16.mxu0 %v752
    %957 = vmatpush1.bf16.msra.mxu0 %v751
    %958 = vmatprep.mubr.bf16.mxu0 %v242
    %959 = vmatmul.mubr.bf16.gmra.mrb[0].mxu0 %v241
    %v960 = vpop.f32.mrb[0].mxu0
    %v961 = vadd.f32 %v209, %v960
    %v962 = vpop.f32.mrb[0].mxu0
    %v963 = vadd.f32 %v213, %v962
    %v964 = vpop.f32.mrb[0].mxu0
    %v965 = vpop.f32.mrb[0].mxu0
    %966 = vdwg.mxu0
    %967 = vmatprep.subr.bf16.mxu0 %v634
    %968 = vmatpush1.bf16.msra.mxu0 %v633
    %969 = vmatprep.subr.bf16.mxu0 %v642
    %970 = vmatpush1.bf16.msra.mxu0 %v641
    %971 = vmatprep.subr.bf16.mxu0 %v650
    %972 = vmatpush1.bf16.msra.mxu0 %v649
    %973 = vmatprep.subr.bf16.mxu0 %v658
    %974 = vmatpush1.bf16.msra.mxu0 %v657
    %975 = vmatprep.subr.bf16.mxu0 %v666
    %976 = vmatpush1.bf16.msra.mxu0 %v665
    %977 = vmatprep.subr.bf16.mxu0 %v674
    %978 = vmatpush1.bf16.msra.mxu0 %v673
    %979 = vmatprep.subr.bf16.mxu0 %v682
    %980 = vmatpush1.bf16.msra.mxu0 %v681
    %981 = vmatprep.subr.bf16.mxu0 %v690
    %982 = vmatpush1.bf16.msra.mxu0 %v689
    %983 = vmatprep.subr.bf16.mxu0 %v698
    %984 = vmatpush1.bf16.msra.mxu0 %v697
    %985 = vmatprep.subr.bf16.mxu0 %v706
    %986 = vmatpush1.bf16.msra.mxu0 %v705
    %987 = vmatprep.subr.bf16.mxu0 %v714
    %988 = vmatpush1.bf16.msra.mxu0 %v713
    %989 = vmatprep.subr.bf16.mxu0 %v722
    %990 = vmatpush1.bf16.msra.mxu0 %v721
    %991 = vmatprep.subr.bf16.mxu0 %v730
    %992 = vmatpush1.bf16.msra.mxu0 %v729
    %993 = vmatprep.subr.bf16.mxu0 %v738
    %994 = vmatpush1.bf16.msra.mxu0 %v737
    %995 = vmatprep.subr.bf16.mxu0 %v746
    %996 = vmatpush1.bf16.msra.mxu0 %v745
    %997 = vmatprep.subr.bf16.mxu0 %v754
    %998 = vmatpush1.bf16.msra.mxu0 %v753
    %999 = vmatprep.mubr.bf16.mxu0 %v242
    %1000 = vmatmul.mubr.bf16.gmra.mrb[0].mxu0 %v241
    %v1001 = vpop.f32.mrb[0].mxu0
    %v1002 = vadd.f32 %v217, %v1001
    %v1003 = vpop.f32.mrb[0].mxu0
    %v1004 = vadd.f32 %v221, %v1003
    %v1005 = vpop.f32.mrb[0].mxu0
    %v1006 = vpop.f32.mrb[0].mxu0
    %1007 = vdwg.mxu0
    %1008 = vmatprep.subr.bf16.mxu0 %v636
    %1009 = vmatpush1.bf16.msra.mxu0 %v635
    %1010 = vmatprep.subr.bf16.mxu0 %v644
    %1011 = vmatpush1.bf16.msra.mxu0 %v643
    %1012 = vmatprep.subr.bf16.mxu0 %v652
    %1013 = vmatpush1.bf16.msra.mxu0 %v651
    %1014 = vmatprep.subr.bf16.mxu0 %v660
    %1015 = vmatpush1.bf16.msra.mxu0 %v659
    %1016 = vmatprep.subr.bf16.mxu0 %v668
    %1017 = vmatpush1.bf16.msra.mxu0 %v667
    %1018 = vmatprep.subr.bf16.mxu0 %v676
    %1019 = vmatpush1.bf16.msra.mxu0 %v675
    %1020 = vmatprep.subr.bf16.mxu0 %v684
    %1021 = vmatpush1.bf16.msra.mxu0 %v683
    %1022 = vmatprep.subr.bf16.mxu0 %v692
    %1023 = vmatpush1.bf16.msra.mxu0 %v691
    %1024 = vmatprep.subr.bf16.mxu0 %v700
    %1025 = vmatpush1.bf16.msra.mxu0 %v699
    %1026 = vmatprep.subr.bf16.mxu0 %v708
    %1027 = vmatpush1.bf16.msra.mxu0 %v707
    %1028 = vmatprep.subr.bf16.mxu0 %v716
    %1029 = vmatpush1.bf16.msra.mxu0 %v715
    %1030 = vmatprep.subr.bf16.mxu0 %v724
    %1031 = vmatpush1.bf16.msra.mxu0 %v723
    %1032 = vmatprep.subr.bf16.mxu0 %v732
    %1033 = vmatpush1.bf16.msra.mxu0 %v731
    %1034 = vmatprep.subr.bf16.mxu0 %v740
    %1035 = vmatpush1.bf16.msra.mxu0 %v739
    %1036 = vmatprep.subr.bf16.mxu0 %v748
    %1037 = vmatpush1.bf16.msra.mxu0 %v747
    %1038 = vmatprep.subr.bf16.mxu0 %v756
    %1039 = vmatpush1.bf16.msra.mxu0 %v755
    %1040 = vmatprep.mubr.bf16.mxu0 %v242
    %1041 = vmatmul.mubr.bf16.gmra.mrb[0].mxu0 %v241
    %v1042 = vpop.f32.mrb[0].mxu0
    %v1043 = vadd.f32 %v225, %v1042
    %v1044 = vpop.f32.mrb[0].mxu0
    %v1045 = vadd.f32 %v229, %v1044
    %v1046 = vpop.f32.mrb[0].mxu0
    %v1047 = vpop.f32.mrb[0].mxu0
    %1048 = vdwg.mxu0
    %v1049 = vmax.f32 %v920, 0.0
    %v1050 = vmax.f32 %v922, 0.0
    %v1051 = vmax.f32 %v961, 0.0
    %v1052 = vmax.f32 %v963, 0.0
    %v1053 = vmax.f32 %v1002, 0.0
    %v1054 = vmax.f32 %v1004, 0.0
    %v1055 = vmax.f32 %v1043, 0.0
    %v1056 = vmax.f32 %v1045, 0.0
    %v1057 = vpack.c.bf16 %v1049, %v1049
    %v1058 = vpack.c.bf16 %v1050, %v1050
    %v1059 = vpack.c.bf16 %v1051, %v1051
    %v1060 = vpack.c.bf16 %v1052, %v1052
    %v1061 = vpack.c.bf16 %v1053, %v1053
    %v1062 = vpack.c.bf16 %v1054, %v1054
    %v1063 = vpack.c.bf16 %v1055, %v1055
    %v1064 = vpack.c.bf16 %v1056, %v1056
    %v1065 = vld [vmem:[#allocation7] sm:$0xff]
    %v1066 = vld [vmem:[#allocation7 + $0x8] sm:$0xff]
    %v1067 = vld [vmem:[#allocation7 + $0x10] sm:$0xff]
    %v1068 = vld [vmem:[#allocation7 + $0x18] sm:$0xff]
    %v1069 = vld [vmem:[#allocation7 + $0x20] sm:$0xff]
    %v1070 = vld [vmem:[#allocation7 + $0x28] sm:$0xff]
    %v1071 = vld [vmem:[#allocation7 + $0x30] sm:$0xff]
    %v1072 = vld [vmem:[#allocation7 + $0x38] sm:$0xff]
    %v1073 = vld [vmem:[#allocation7 + $0x40] sm:$0xff]
    %v1074 = vld [vmem:[#allocation7 + $0x48] sm:$0xff]
    %v1075 = vld [vmem:[#allocation7 + $0x50] sm:$0xff]
    %v1076 = vld [vmem:[#allocation7 + $0x58] sm:$0xff]
    %v1077 = vld [vmem:[#allocation7 + $0x60] sm:$0xff]
    %v1078 = vld [vmem:[#allocation7 + $0x68] sm:$0xff]
    %v1079 = vld [vmem:[#allocation7 + $0x70] sm:$0xff]
    %v1080 = vld [vmem:[#allocation7 + $0x78] sm:$0xff]
    %v1081 = vld [vmem:[#allocation7 + $0x80] sm:$0xff]
    %v1082 = vld [vmem:[#allocation7 + $0x88] sm:$0xff]
    %v1083 = vld [vmem:[#allocation7 + $0x90] sm:$0xff]
    %v1084 = vld [vmem:[#allocation7 + $0x98] sm:$0xff]
    %v1085 = vld [vmem:[#allocation7 + $0xa0] sm:$0xff]
    %v1086 = vld [vmem:[#allocation7 + $0xa8] sm:$0xff]
    %v1087 = vld [vmem:[#allocation7 + $0xb0] sm:$0xff]
    %v1088 = vld [vmem:[#allocation7 + $0xb8] sm:$0xff]
    %v1089 = vld [vmem:[#allocation7 + $0xc0] sm:$0xff]
    %v1090 = vld [vmem:[#allocation7 + $0xc8] sm:$0xff]
    %v1091 = vld [vmem:[#allocation7 + $0xd0] sm:$0xff]
    %v1092 = vld [vmem:[#allocation7 + $0xd8] sm:$0xff]
    %v1093 = vld [vmem:[#allocation7 + $0xe0] sm:$0xff]
    %v1094 = vld [vmem:[#allocation7 + $0xe8] sm:$0xff]
    %v1095 = vld [vmem:[#allocation7 + $0xf0] sm:$0xff]
    %v1096 = vld [vmem:[#allocation7 + $0xf8] sm:$0xff]
    %v1097 = vld [vmem:[#allocation7 + $0x100] sm:$0xff]
    %v1098 = vld [vmem:[#allocation7 + $0x108] sm:$0xff]
    %v1099 = vld [vmem:[#allocation7 + $0x110] sm:$0xff]
    %v1100 = vld [vmem:[#allocation7 + $0x118] sm:$0xff]
    %v1101 = vld [vmem:[#allocation7 + $0x120] sm:$0xff]
    %v1102 = vld [vmem:[#allocation7 + $0x128] sm:$0xff]
    %v1103 = vld [vmem:[#allocation7 + $0x130] sm:$0xff]
    %v1104 = vld [vmem:[#allocation7 + $0x138] sm:$0xff]
    %v1105 = vld [vmem:[#allocation7 + $0x140] sm:$0xff]
    %v1106 = vld [vmem:[#allocation7 + $0x148] sm:$0xff]
    %v1107 = vld [vmem:[#allocation7 + $0x150] sm:$0xff]
    %v1108 = vld [vmem:[#allocation7 + $0x158] sm:$0xff]
    %v1109 = vld [vmem:[#allocation7 + $0x160] sm:$0xff]
    %v1110 = vld [vmem:[#allocation7 + $0x168] sm:$0xff]
    %v1111 = vld [vmem:[#allocation7 + $0x170] sm:$0xff]
    %v1112 = vld [vmem:[#allocation7 + $0x178] sm:$0xff]
    %v1113 = vld [vmem:[#allocation7 + $0x180] sm:$0xff]
    %v1114 = vld [vmem:[#allocation7 + $0x188] sm:$0xff]
    %v1115 = vld [vmem:[#allocation7 + $0x190] sm:$0xff]
    %v1116 = vld [vmem:[#allocation7 + $0x198] sm:$0xff]
    %v1117 = vld [vmem:[#allocation7 + $0x1a0] sm:$0xff]
    %v1118 = vld [vmem:[#allocation7 + $0x1a8] sm:$0xff]
    %v1119 = vld [vmem:[#allocation7 + $0x1b0] sm:$0xff]
    %v1120 = vld [vmem:[#allocation7 + $0x1b8] sm:$0xff]
    %v1121 = vld [vmem:[#allocation7 + $0x1c0] sm:$0xff]
    %v1122 = vld [vmem:[#allocation7 + $0x1c8] sm:$0xff]
    %v1123 = vld [vmem:[#allocation7 + $0x1d0] sm:$0xff]
    %v1124 = vld [vmem:[#allocation7 + $0x1d8] sm:$0xff]
    %v1125 = vld [vmem:[#allocation7 + $0x1e0] sm:$0xff]
    %v1126 = vld [vmem:[#allocation7 + $0x1e8] sm:$0xff]
    %v1127 = vld [vmem:[#allocation7 + $0x1f0] sm:$0xff]
    %v1128 = vld [vmem:[#allocation7 + $0x1f8] sm:$0xff]
    %v1129 = vld [vmem:[#allocation7 + $0x200] sm:$0xff]
    %v1130 = vld [vmem:[#allocation7 + $0x208] sm:$0xff]
    %v1131 = vld [vmem:[#allocation7 + $0x210] sm:$0xff]
    %v1132 = vld [vmem:[#allocation7 + $0x218] sm:$0xff]
    %v1133 = vld [vmem:[#allocation7 + $0x220] sm:$0xff]
    %v1134 = vld [vmem:[#allocation7 + $0x228] sm:$0xff]
    %v1135 = vld [vmem:[#allocation7 + $0x230] sm:$0xff]
    %v1136 = vld [vmem:[#allocation7 + $0x238] sm:$0xff]
    %v1137 = vld [vmem:[#allocation7 + $0x240] sm:$0xff]
    %v1138 = vld [vmem:[#allocation7 + $0x248] sm:$0xff]
    %v1139 = vld [vmem:[#allocation7 + $0x250] sm:$0xff]
    %v1140 = vld [vmem:[#allocation7 + $0x258] sm:$0xff]
    %v1141 = vld [vmem:[#allocation7 + $0x260] sm:$0xff]
    %v1142 = vld [vmem:[#allocation7 + $0x268] sm:$0xff]
    %v1143 = vld [vmem:[#allocation7 + $0x270] sm:$0xff]
    %v1144 = vld [vmem:[#allocation7 + $0x278] sm:$0xff]
    %v1145 = vld [vmem:[#allocation7 + $0x280] sm:$0xff]
    %v1146 = vld [vmem:[#allocation7 + $0x288] sm:$0xff]
    %v1147 = vld [vmem:[#allocation7 + $0x290] sm:$0xff]
    %v1148 = vld [vmem:[#allocation7 + $0x298] sm:$0xff]
    %v1149 = vld [vmem:[#allocation7 + $0x2a0] sm:$0xff]
    %v1150 = vld [vmem:[#allocation7 + $0x2a8] sm:$0xff]
    %v1151 = vld [vmem:[#allocation7 + $0x2b0] sm:$0xff]
    %v1152 = vld [vmem:[#allocation7 + $0x2b8] sm:$0xff]
    %v1153 = vld [vmem:[#allocation7 + $0x2c0] sm:$0xff]
    %v1154 = vld [vmem:[#allocation7 + $0x2c8] sm:$0xff]
    %v1155 = vld [vmem:[#allocation7 + $0x2d0] sm:$0xff]
    %v1156 = vld [vmem:[#allocation7 + $0x2d8] sm:$0xff]
    %v1157 = vld [vmem:[#allocation7 + $0x2e0] sm:$0xff]
    %v1158 = vld [vmem:[#allocation7 + $0x2e8] sm:$0xff]
    %v1159 = vld [vmem:[#allocation7 + $0x2f0] sm:$0xff]
    %v1160 = vld [vmem:[#allocation7 + $0x2f8] sm:$0xff]
    %v1161 = vld [vmem:[#allocation7 + $0x300] sm:$0xff]
    %v1162 = vld [vmem:[#allocation7 + $0x308] sm:$0xff]
    %v1163 = vld [vmem:[#allocation7 + $0x310] sm:$0xff]
    %v1164 = vld [vmem:[#allocation7 + $0x318] sm:$0xff]
    %v1165 = vld [vmem:[#allocation7 + $0x320] sm:$0xff]
    %v1166 = vld [vmem:[#allocation7 + $0x328] sm:$0xff]
    %v1167 = vld [vmem:[#allocation7 + $0x330] sm:$0xff]
    %v1168 = vld [vmem:[#allocation7 + $0x338] sm:$0xff]
    %v1169 = vld [vmem:[#allocation7 + $0x340] sm:$0xff]
    %v1170 = vld [vmem:[#allocation7 + $0x348] sm:$0xff]
    %v1171 = vld [vmem:[#allocation7 + $0x350] sm:$0xff]
    %v1172 = vld [vmem:[#allocation7 + $0x358] sm:$0xff]
    %v1173 = vld [vmem:[#allocation7 + $0x360] sm:$0xff]
    %v1174 = vld [vmem:[#allocation7 + $0x368] sm:$0xff]
    %v1175 = vld [vmem:[#allocation7 + $0x370] sm:$0xff]
    %v1176 = vld [vmem:[#allocation7 + $0x378] sm:$0xff]
    %v1177 = vld [vmem:[#allocation7 + $0x380] sm:$0xff]
    %v1178 = vld [vmem:[#allocation7 + $0x388] sm:$0xff]
    %v1179 = vld [vmem:[#allocation7 + $0x390] sm:$0xff]
    %v1180 = vld [vmem:[#allocation7 + $0x398] sm:$0xff]
    %v1181 = vld [vmem:[#allocation7 + $0x3a0] sm:$0xff]
    %v1182 = vld [vmem:[#allocation7 + $0x3a8] sm:$0xff]
    %v1183 = vld [vmem:[#allocation7 + $0x3b0] sm:$0xff]
    %v1184 = vld [vmem:[#allocation7 + $0x3b8] sm:$0xff]
    %v1185 = vld [vmem:[#allocation7 + $0x3c0] sm:$0xff]
    %v1186 = vld [vmem:[#allocation7 + $0x3c8] sm:$0xff]
    %v1187 = vld [vmem:[#allocation7 + $0x3d0] sm:$0xff]
    %v1188 = vld [vmem:[#allocation7 + $0x3d8] sm:$0xff]
    %v1189 = vld [vmem:[#allocation7 + $0x3e0] sm:$0xff]
    %v1190 = vld [vmem:[#allocation7 + $0x3e8] sm:$0xff]
    %v1191 = vld [vmem:[#allocation7 + $0x3f0] sm:$0xff]
    %v1192 = vld [vmem:[#allocation7 + $0x3f8] sm:$0xff]
    %v1193 = vld [vmem:[%s4] sm:$0x3]
    %v1195 = vlaneseq
    %v1196 = vshrl.u32 %v1195, 7
    %v1197 = vsub.s32 0, %v1196
    %v1198 = vrot.slane %v1193, %v1197
    %v1199 = vlaneseq
    %v1200 = vshrl.u32 %v1199, 7
    %v1201 = vsub.s32 1, %v1200
    %v1202 = vrot.slane %v1193, %v1201
    %v1333 = vunpack.c.l.b16 %v1065
    %v1334 = vunpack.c.h.b16 %v1065
    %v1335 = vunpack.c.l.b16 %v1066
    %v1336 = vunpack.c.h.b16 %v1066
    %v1337 = vunpack.c.l.b16 %v1067
    %v1338 = vunpack.c.h.b16 %v1067
    %v1339 = vunpack.c.l.b16 %v1068
    %v1340 = vunpack.c.h.b16 %v1068
    %v1341 = vunpack.c.l.b16 %v1069
    %v1342 = vunpack.c.h.b16 %v1069
    %v1343 = vunpack.c.l.b16 %v1070
    %v1344 = vunpack.c.h.b16 %v1070
    %v1345 = vunpack.c.l.b16 %v1071
    %v1346 = vunpack.c.h.b16 %v1071
    %v1347 = vunpack.c.l.b16 %v1072
    %v1348 = vunpack.c.h.b16 %v1072
    %v1349 = vunpack.c.l.b16 %v1073
    %v1350 = vunpack.c.h.b16 %v1073
    %v1351 = vunpack.c.l.b16 %v1074
    %v1352 = vunpack.c.h.b16 %v1074
    %v1353 = vunpack.c.l.b16 %v1075
    %v1354 = vunpack.c.h.b16 %v1075
    %v1355 = vunpack.c.l.b16 %v1076
    %v1356 = vunpack.c.h.b16 %v1076
    %v1357 = vunpack.c.l.b16 %v1077
    %v1358 = vunpack.c.h.b16 %v1077
    %v1359 = vunpack.c.l.b16 %v1078
    %v1360 = vunpack.c.h.b16 %v1078
    %v1361 = vunpack.c.l.b16 %v1079
    %v1362 = vunpack.c.h.b16 %v1079
    %v1363 = vunpack.c.l.b16 %v1080
    %v1364 = vunpack.c.h.b16 %v1080
    %v1365 = vunpack.c.l.b16 %v1081
    %v1366 = vunpack.c.h.b16 %v1081
    %v1367 = vunpack.c.l.b16 %v1082
    %v1368 = vunpack.c.h.b16 %v1082
    %v1369 = vunpack.c.l.b16 %v1083
    %v1370 = vunpack.c.h.b16 %v1083
    %v1371 = vunpack.c.l.b16 %v1084
    %v1372 = vunpack.c.h.b16 %v1084
    %v1373 = vunpack.c.l.b16 %v1085
    %v1374 = vunpack.c.h.b16 %v1085
    %v1375 = vunpack.c.l.b16 %v1086
    %v1376 = vunpack.c.h.b16 %v1086
    %v1377 = vunpack.c.l.b16 %v1087
    %v1378 = vunpack.c.h.b16 %v1087
    %v1379 = vunpack.c.l.b16 %v1088
    %v1380 = vunpack.c.h.b16 %v1088
    %v1381 = vunpack.c.l.b16 %v1089
    %v1382 = vunpack.c.h.b16 %v1089
    %v1383 = vunpack.c.l.b16 %v1090
    %v1384 = vunpack.c.h.b16 %v1090
    %v1385 = vunpack.c.l.b16 %v1091
    %v1386 = vunpack.c.h.b16 %v1091
    %v1387 = vunpack.c.l.b16 %v1092
    %v1388 = vunpack.c.h.b16 %v1092
    %v1389 = vunpack.c.l.b16 %v1093
    %v1390 = vunpack.c.h.b16 %v1093
    %v1391 = vunpack.c.l.b16 %v1094
    %v1392 = vunpack.c.h.b16 %v1094
    %v1393 = vunpack.c.l.b16 %v1095
    %v1394 = vunpack.c.h.b16 %v1095
    %v1395 = vunpack.c.l.b16 %v1096
    %v1396 = vunpack.c.h.b16 %v1096
    %v1397 = vunpack.c.l.b16 %v1097
    %v1398 = vunpack.c.h.b16 %v1097
    %v1399 = vunpack.c.l.b16 %v1098
    %v1400 = vunpack.c.h.b16 %v1098
    %v1401 = vunpack.c.l.b16 %v1099
    %v1402 = vunpack.c.h.b16 %v1099
    %v1403 = vunpack.c.l.b16 %v1100
    %v1404 = vunpack.c.h.b16 %v1100
    %v1405 = vunpack.c.l.b16 %v1101
    %v1406 = vunpack.c.h.b16 %v1101
    %v1407 = vunpack.c.l.b16 %v1102
    %v1408 = vunpack.c.h.b16 %v1102
    %v1409 = vunpack.c.l.b16 %v1103
    %v1410 = vunpack.c.h.b16 %v1103
    %v1411 = vunpack.c.l.b16 %v1104
    %v1412 = vunpack.c.h.b16 %v1104
    %v1413 = vunpack.c.l.b16 %v1105
    %v1414 = vunpack.c.h.b16 %v1105
    %v1415 = vunpack.c.l.b16 %v1106
    %v1416 = vunpack.c.h.b16 %v1106
    %v1417 = vunpack.c.l.b16 %v1107
    %v1418 = vunpack.c.h.b16 %v1107
    %v1419 = vunpack.c.l.b16 %v1108
    %v1420 = vunpack.c.h.b16 %v1108
    %v1421 = vunpack.c.l.b16 %v1109
    %v1422 = vunpack.c.h.b16 %v1109
    %v1423 = vunpack.c.l.b16 %v1110
    %v1424 = vunpack.c.h.b16 %v1110
    %v1425 = vunpack.c.l.b16 %v1111
    %v1426 = vunpack.c.h.b16 %v1111
    %v1427 = vunpack.c.l.b16 %v1112
    %v1428 = vunpack.c.h.b16 %v1112
    %v1429 = vunpack.c.l.b16 %v1113
    %v1430 = vunpack.c.h.b16 %v1113
    %v1431 = vunpack.c.l.b16 %v1114
    %v1432 = vunpack.c.h.b16 %v1114
    %v1433 = vunpack.c.l.b16 %v1115
    %v1434 = vunpack.c.h.b16 %v1115
    %v1435 = vunpack.c.l.b16 %v1116
    %v1436 = vunpack.c.h.b16 %v1116
    %v1437 = vunpack.c.l.b16 %v1117
    %v1438 = vunpack.c.h.b16 %v1117
    %v1439 = vunpack.c.l.b16 %v1118
    %v1440 = vunpack.c.h.b16 %v1118
    %v1441 = vunpack.c.l.b16 %v1119
    %v1442 = vunpack.c.h.b16 %v1119
    %v1443 = vunpack.c.l.b16 %v1120
    %v1444 = vunpack.c.h.b16 %v1120
    %v1445 = vunpack.c.l.b16 %v1121
    %v1446 = vunpack.c.h.b16 %v1121
    %v1447 = vunpack.c.l.b16 %v1122
    %v1448 = vunpack.c.h.b16 %v1122
    %v1449 = vunpack.c.l.b16 %v1123
    %v1450 = vunpack.c.h.b16 %v1123
    %v1451 = vunpack.c.l.b16 %v1124
    %v1452 = vunpack.c.h.b16 %v1124
    %v1453 = vunpack.c.l.b16 %v1125
    %v1454 = vunpack.c.h.b16 %v1125
    %v1455 = vunpack.c.l.b16 %v1126
    %v1456 = vunpack.c.h.b16 %v1126
    %v1457 = vunpack.c.l.b16 %v1127
    %v1458 = vunpack.c.h.b16 %v1127
    %v1459 = vunpack.c.l.b16 %v1128
    %v1460 = vunpack.c.h.b16 %v1128
    %v1461 = vunpack.c.l.b16 %v1129
    %v1462 = vunpack.c.h.b16 %v1129
    %v1463 = vunpack.c.l.b16 %v1130
    %v1464 = vunpack.c.h.b16 %v1130
    %v1465 = vunpack.c.l.b16 %v1131
    %v1466 = vunpack.c.h.b16 %v1131
    %v1467 = vunpack.c.l.b16 %v1132
    %v1468 = vunpack.c.h.b16 %v1132
    %v1469 = vunpack.c.l.b16 %v1133
    %v1470 = vunpack.c.h.b16 %v1133
    %v1471 = vunpack.c.l.b16 %v1134
    %v1472 = vunpack.c.h.b16 %v1134
    %v1473 = vunpack.c.l.b16 %v1135
    %v1474 = vunpack.c.h.b16 %v1135
    %v1475 = vunpack.c.l.b16 %v1136
    %v1476 = vunpack.c.h.b16 %v1136
    %v1477 = vunpack.c.l.b16 %v1137
    %v1478 = vunpack.c.h.b16 %v1137
    %v1479 = vunpack.c.l.b16 %v1138
    %v1480 = vunpack.c.h.b16 %v1138
    %v1481 = vunpack.c.l.b16 %v1139
    %v1482 = vunpack.c.h.b16 %v1139
    %v1483 = vunpack.c.l.b16 %v1140
    %v1484 = vunpack.c.h.b16 %v1140
    %v1485 = vunpack.c.l.b16 %v1141
    %v1486 = vunpack.c.h.b16 %v1141
    %v1487 = vunpack.c.l.b16 %v1142
    %v1488 = vunpack.c.h.b16 %v1142
    %v1489 = vunpack.c.l.b16 %v1143
    %v1490 = vunpack.c.h.b16 %v1143
    %v1491 = vunpack.c.l.b16 %v1144
    %v1492 = vunpack.c.h.b16 %v1144
    %v1493 = vunpack.c.l.b16 %v1145
    %v1494 = vunpack.c.h.b16 %v1145
    %v1495 = vunpack.c.l.b16 %v1146
    %v1496 = vunpack.c.h.b16 %v1146
    %v1497 = vunpack.c.l.b16 %v1147
    %v1498 = vunpack.c.h.b16 %v1147
    %v1499 = vunpack.c.l.b16 %v1148
    %v1500 = vunpack.c.h.b16 %v1148
    %v1501 = vunpack.c.l.b16 %v1149
    %v1502 = vunpack.c.h.b16 %v1149
    %v1503 = vunpack.c.l.b16 %v1150
    %v1504 = vunpack.c.h.b16 %v1150
    %v1505 = vunpack.c.l.b16 %v1151
    %v1506 = vunpack.c.h.b16 %v1151
    %v1507 = vunpack.c.l.b16 %v1152
    %v1508 = vunpack.c.h.b16 %v1152
    %v1509 = vunpack.c.l.b16 %v1153
    %v1510 = vunpack.c.h.b16 %v1153
    %v1511 = vunpack.c.l.b16 %v1154
    %v1512 = vunpack.c.h.b16 %v1154
    %v1513 = vunpack.c.l.b16 %v1155
    %v1514 = vunpack.c.h.b16 %v1155
    %v1515 = vunpack.c.l.b16 %v1156
    %v1516 = vunpack.c.h.b16 %v1156
    %v1517 = vunpack.c.l.b16 %v1157
    %v1518 = vunpack.c.h.b16 %v1157
    %v1519 = vunpack.c.l.b16 %v1158
    %v1520 = vunpack.c.h.b16 %v1158
    %v1521 = vunpack.c.l.b16 %v1159
    %v1522 = vunpack.c.h.b16 %v1159
    %v1523 = vunpack.c.l.b16 %v1160
    %v1524 = vunpack.c.h.b16 %v1160
    %v1525 = vunpack.c.l.b16 %v1161
    %v1526 = vunpack.c.h.b16 %v1161
    %v1527 = vunpack.c.l.b16 %v1162
    %v1528 = vunpack.c.h.b16 %v1162
    %v1529 = vunpack.c.l.b16 %v1163
    %v1530 = vunpack.c.h.b16 %v1163
    %v1531 = vunpack.c.l.b16 %v1164
    %v1532 = vunpack.c.h.b16 %v1164
    %v1533 = vunpack.c.l.b16 %v1165
    %v1534 = vunpack.c.h.b16 %v1165
    %v1535 = vunpack.c.l.b16 %v1166
    %v1536 = vunpack.c.h.b16 %v1166
    %v1537 = vunpack.c.l.b16 %v1167
    %v1538 = vunpack.c.h.b16 %v1167
    %v1539 = vunpack.c.l.b16 %v1168
    %v1540 = vunpack.c.h.b16 %v1168
    %v1541 = vunpack.c.l.b16 %v1169
    %v1542 = vunpack.c.h.b16 %v1169
    %v1543 = vunpack.c.l.b16 %v1170
    %v1544 = vunpack.c.h.b16 %v1170
    %v1545 = vunpack.c.l.b16 %v1171
    %v1546 = vunpack.c.h.b16 %v1171
    %v1547 = vunpack.c.l.b16 %v1172
    %v1548 = vunpack.c.h.b16 %v1172
    %v1549 = vunpack.c.l.b16 %v1173
    %v1550 = vunpack.c.h.b16 %v1173
    %v1551 = vunpack.c.l.b16 %v1174
    %v1552 = vunpack.c.h.b16 %v1174
    %v1553 = vunpack.c.l.b16 %v1175
    %v1554 = vunpack.c.h.b16 %v1175
    %v1555 = vunpack.c.l.b16 %v1176
    %v1556 = vunpack.c.h.b16 %v1176
    %v1557 = vunpack.c.l.b16 %v1177
    %v1558 = vunpack.c.h.b16 %v1177
    %v1559 = vunpack.c.l.b16 %v1178
    %v1560 = vunpack.c.h.b16 %v1178
    %v1561 = vunpack.c.l.b16 %v1179
    %v1562 = vunpack.c.h.b16 %v1179
    %v1563 = vunpack.c.l.b16 %v1180
    %v1564 = vunpack.c.h.b16 %v1180
    %v1565 = vunpack.c.l.b16 %v1181
    %v1566 = vunpack.c.h.b16 %v1181
    %v1567 = vunpack.c.l.b16 %v1182
    %v1568 = vunpack.c.h.b16 %v1182
    %v1569 = vunpack.c.l.b16 %v1183
    %v1570 = vunpack.c.h.b16 %v1183
    %v1571 = vunpack.c.l.b16 %v1184
    %v1572 = vunpack.c.h.b16 %v1184
    %v1573 = vunpack.c.l.b16 %v1185
    %v1574 = vunpack.c.h.b16 %v1185
    %v1575 = vunpack.c.l.b16 %v1186
    %v1576 = vunpack.c.h.b16 %v1186
    %v1577 = vunpack.c.l.b16 %v1187
    %v1578 = vunpack.c.h.b16 %v1187
    %v1579 = vunpack.c.l.b16 %v1188
    %v1580 = vunpack.c.h.b16 %v1188
    %v1581 = vunpack.c.l.b16 %v1189
    %v1582 = vunpack.c.h.b16 %v1189
    %v1583 = vunpack.c.l.b16 %v1190
    %v1584 = vunpack.c.h.b16 %v1190
    %v1585 = vunpack.c.l.b16 %v1191
    %v1586 = vunpack.c.h.b16 %v1191
    %v1587 = vunpack.c.l.b16 %v1192
    %v1588 = vunpack.c.h.b16 %v1192
    %v1589 = vpack.c.b16 %v1335, %v1333
    %v1590 = vpack.c.b16 %v1336, %v1334
    %v1591 = vpack.c.b16 %v1339, %v1337
    %v1592 = vpack.c.b16 %v1340, %v1338
    %v1593 = vpack.c.b16 %v1343, %v1341
    %v1594 = vpack.c.b16 %v1344, %v1342
    %v1595 = vpack.c.b16 %v1347, %v1345
    %v1596 = vpack.c.b16 %v1348, %v1346
    %v1597 = vpack.c.b16 %v1351, %v1349
    %v1598 = vpack.c.b16 %v1352, %v1350
    %v1599 = vpack.c.b16 %v1355, %v1353
    %v1600 = vpack.c.b16 %v1356, %v1354
    %v1601 = vpack.c.b16 %v1359, %v1357
    %v1602 = vpack.c.b16 %v1360, %v1358
    %v1603 = vpack.c.b16 %v1363, %v1361
    %v1604 = vpack.c.b16 %v1364, %v1362
    %v1605 = vpack.c.b16 %v1367, %v1365
    %v1606 = vpack.c.b16 %v1368, %v1366
    %v1607 = vpack.c.b16 %v1371, %v1369
    %v1608 = vpack.c.b16 %v1372, %v1370
    %v1609 = vpack.c.b16 %v1375, %v1373
    %v1610 = vpack.c.b16 %v1376, %v1374
    %v1611 = vpack.c.b16 %v1379, %v1377
    %v1612 = vpack.c.b16 %v1380, %v1378
    %v1613 = vpack.c.b16 %v1383, %v1381
    %v1614 = vpack.c.b16 %v1384, %v1382
    %v1615 = vpack.c.b16 %v1387, %v1385
    %v1616 = vpack.c.b16 %v1388, %v1386
    %v1617 = vpack.c.b16 %v1391, %v1389
    %v1618 = vpack.c.b16 %v1392, %v1390
    %v1619 = vpack.c.b16 %v1395, %v1393
    %v1620 = vpack.c.b16 %v1396, %v1394
    %v1621 = vpack.c.b16 %v1399, %v1397
    %v1622 = vpack.c.b16 %v1400, %v1398
    %v1623 = vpack.c.b16 %v1403, %v1401
    %v1624 = vpack.c.b16 %v1404, %v1402
    %v1625 = vpack.c.b16 %v1407, %v1405
    %v1626 = vpack.c.b16 %v1408, %v1406
    %v1627 = vpack.c.b16 %v1411, %v1409
    %v1628 = vpack.c.b16 %v1412, %v1410
    %v1629 = vpack.c.b16 %v1415, %v1413
    %v1630 = vpack.c.b16 %v1416, %v1414
    %v1631 = vpack.c.b16 %v1419, %v1417
    %v1632 = vpack.c.b16 %v1420, %v1418
    %v1633 = vpack.c.b16 %v1423, %v1421
    %v1634 = vpack.c.b16 %v1424, %v1422
    %v1635 = vpack.c.b16 %v1427, %v1425
    %v1636 = vpack.c.b16 %v1428, %v1426
    %v1637 = vpack.c.b16 %v1431, %v1429
    %v1638 = vpack.c.b16 %v1432, %v1430
    %v1639 = vpack.c.b16 %v1435, %v1433
    %v1640 = vpack.c.b16 %v1436, %v1434
    %v1641 = vpack.c.b16 %v1439, %v1437
    %v1642 = vpack.c.b16 %v1440, %v1438
    %v1643 = vpack.c.b16 %v1443, %v1441
    %v1644 = vpack.c.b16 %v1444, %v1442
    %v1645 = vpack.c.b16 %v1447, %v1445
    %v1646 = vpack.c.b16 %v1448, %v1446
    %v1647 = vpack.c.b16 %v1451, %v1449
    %v1648 = vpack.c.b16 %v1452, %v1450
    %v1649 = vpack.c.b16 %v1455, %v1453
    %v1650 = vpack.c.b16 %v1456, %v1454
    %v1651 = vpack.c.b16 %v1459, %v1457
    %v1652 = vpack.c.b16 %v1460, %v1458
    %v1653 = vpack.c.b16 %v1463, %v1461
    %v1654 = vpack.c.b16 %v1464, %v1462
    %v1655 = vpack.c.b16 %v1467, %v1465
    %v1656 = vpack.c.b16 %v1468, %v1466
    %v1657 = vpack.c.b16 %v1471, %v1469
    %v1658 = vpack.c.b16 %v1472, %v1470
    %v1659 = vpack.c.b16 %v1475, %v1473
    %v1660 = vpack.c.b16 %v1476, %v1474
    %v1661 = vpack.c.b16 %v1479, %v1477
    %v1662 = vpack.c.b16 %v1480, %v1478
    %v1663 = vpack.c.b16 %v1483, %v1481
    %v1664 = vpack.c.b16 %v1484, %v1482
    %v1665 = vpack.c.b16 %v1487, %v1485
    %v1666 = vpack.c.b16 %v1488, %v1486
    %v1667 = vpack.c.b16 %v1491, %v1489
    %v1668 = vpack.c.b16 %v1492, %v1490
    %v1669 = vpack.c.b16 %v1495, %v1493
    %v1670 = vpack.c.b16 %v1496, %v1494
    %v1671 = vpack.c.b16 %v1499, %v1497
    %v1672 = vpack.c.b16 %v1500, %v1498
    %v1673 = vpack.c.b16 %v1503, %v1501
    %v1674 = vpack.c.b16 %v1504, %v1502
    %v1675 = vpack.c.b16 %v1507, %v1505
    %v1676 = vpack.c.b16 %v1508, %v1506
    %v1677 = vpack.c.b16 %v1511, %v1509
    %v1678 = vpack.c.b16 %v1512, %v1510
    %v1679 = vpack.c.b16 %v1515, %v1513
    %v1680 = vpack.c.b16 %v1516, %v1514
    %v1681 = vpack.c.b16 %v1519, %v1517
    %v1682 = vpack.c.b16 %v1520, %v1518
    %v1683 = vpack.c.b16 %v1523, %v1521
    %v1684 = vpack.c.b16 %v1524, %v1522
    %v1685 = vpack.c.b16 %v1527, %v1525
    %v1686 = vpack.c.b16 %v1528, %v1526
    %v1687 = vpack.c.b16 %v1531, %v1529
    %v1688 = vpack.c.b16 %v1532, %v1530
    %v1689 = vpack.c.b16 %v1535, %v1533
    %v1690 = vpack.c.b16 %v1536, %v1534
    %v1691 = vpack.c.b16 %v1539, %v1537
    %v1692 = vpack.c.b16 %v1540, %v1538
    %v1693 = vpack.c.b16 %v1543, %v1541
    %v1694 = vpack.c.b16 %v1544, %v1542
    %v1695 = vpack.c.b16 %v1547, %v1545
    %v1696 = vpack.c.b16 %v1548, %v1546
    %v1697 = vpack.c.b16 %v1551, %v1549
    %v1698 = vpack.c.b16 %v1552, %v1550
    %v1699 = vpack.c.b16 %v1555, %v1553
    %v1700 = vpack.c.b16 %v1556, %v1554
    %v1701 = vpack.c.b16 %v1559, %v1557
    %v1702 = vpack.c.b16 %v1560, %v1558
    %v1703 = vpack.c.b16 %v1563, %v1561
    %v1704 = vpack.c.b16 %v1564, %v1562
    %v1705 = vpack.c.b16 %v1567, %v1565
    %v1706 = vpack.c.b16 %v1568, %v1566
    %v1707 = vpack.c.b16 %v1571, %v1569
    %v1708 = vpack.c.b16 %v1572, %v1570
    %v1709 = vpack.c.b16 %v1575, %v1573
    %v1710 = vpack.c.b16 %v1576, %v1574
    %v1711 = vpack.c.b16 %v1579, %v1577
    %v1712 = vpack.c.b16 %v1580, %v1578
    %v1713 = vpack.c.b16 %v1583, %v1581
    %v1714 = vpack.c.b16 %v1584, %v1582
    %v1715 = vpack.c.b16 %v1587, %v1585
    %v1716 = vpack.c.b16 %v1588, %v1586
    %1845 = vmatprep.subr.bf16.mxu0 %v1590
    %1846 = vmatpush1.bf16.msra.mxu0 %v1589
    %1847 = vmatprep.subr.bf16.mxu0 %v1592
    %1848 = vmatpush1.bf16.msra.mxu0 %v1591
    %1849 = vmatprep.subr.bf16.mxu0 %v1594
    %1850 = vmatpush1.bf16.msra.mxu0 %v1593
    %1851 = vmatprep.subr.bf16.mxu0 %v1596
    %1852 = vmatpush1.bf16.msra.mxu0 %v1595
    %1853 = vmatprep.subr.bf16.mxu0 %v1598
    %1854 = vmatpush1.bf16.msra.mxu0 %v1597
    %1855 = vmatprep.subr.bf16.mxu0 %v1600
    %1856 = vmatpush1.bf16.msra.mxu0 %v1599
    %1857 = vmatprep.subr.bf16.mxu0 %v1602
    %1858 = vmatpush1.bf16.msra.mxu0 %v1601
    %1859 = vmatprep.subr.bf16.mxu0 %v1604
    %1860 = vmatpush1.bf16.msra.mxu0 %v1603
    %1861 = vmatprep.subr.bf16.mxu0 %v1606
    %1862 = vmatpush1.bf16.msra.mxu0 %v1605
    %1863 = vmatprep.subr.bf16.mxu0 %v1608
    %1864 = vmatpush1.bf16.msra.mxu0 %v1607
    %1865 = vmatprep.subr.bf16.mxu0 %v1610
    %1866 = vmatpush1.bf16.msra.mxu0 %v1609
    %1867 = vmatprep.subr.bf16.mxu0 %v1612
    %1868 = vmatpush1.bf16.msra.mxu0 %v1611
    %1869 = vmatprep.subr.bf16.mxu0 %v1614
    %1870 = vmatpush1.bf16.msra.mxu0 %v1613
    %1871 = vmatprep.subr.bf16.mxu0 %v1616
    %1872 = vmatpush1.bf16.msra.mxu0 %v1615
    %1873 = vmatprep.subr.bf16.mxu0 %v1618
    %1874 = vmatpush1.bf16.msra.mxu0 %v1617
    %1875 = vmatprep.subr.bf16.mxu0 %v1620
    %1876 = vmatpush1.bf16.msra.mxu0 %v1619
    %1877 = vmatprep.mubr.bf16.mxu0 %v1058
    %1878 = vmatmul.mubr.bf16.gmra.mrb[0].mxu0 %v1057
    %v1879 = vpop.f32.mrb[0].mxu0
    %v1880 = vadd.f32 %v1198, %v1879
    %v1881 = vpop.f32.mrb[0].mxu0
    %v1882 = vadd.f32 %v1202, %v1881
    %v1883 = vpop.f32.mrb[0].mxu0
    %v1884 = vpop.f32.mrb[0].mxu0
    %1885 = vdwg.mxu0
    %1886 = vmatprep.subr.bf16.mxu0 %v1622
    %1887 = vmatpush1.bf16.msra.mxu0 %v1621
    %1888 = vmatprep.subr.bf16.mxu0 %v1624
    %1889 = vmatpush1.bf16.msra.mxu0 %v1623
    %1890 = vmatprep.subr.bf16.mxu0 %v1626
    %1891 = vmatpush1.bf16.msra.mxu0 %v1625
    %1892 = vmatprep.subr.bf16.mxu0 %v1628
    %1893 = vmatpush1.bf16.msra.mxu0 %v1627
    %1894 = vmatprep.subr.bf16.mxu0 %v1630
    %1895 = vmatpush1.bf16.msra.mxu0 %v1629
    %1896 = vmatprep.subr.bf16.mxu0 %v1632
    %1897 = vmatpush1.bf16.msra.mxu0 %v1631
    %1898 = vmatprep.subr.bf16.mxu0 %v1634
    %1899 = vmatpush1.bf16.msra.mxu0 %v1633
    %1900 = vmatprep.subr.bf16.mxu0 %v1636
    %1901 = vmatpush1.bf16.msra.mxu0 %v1635
    %1902 = vmatprep.subr.bf16.mxu0 %v1638
    %1903 = vmatpush1.bf16.msra.mxu0 %v1637
    %1904 = vmatprep.subr.bf16.mxu0 %v1640
    %1905 = vmatpush1.bf16.msra.mxu0 %v1639
    %1906 = vmatprep.subr.bf16.mxu0 %v1642
    %1907 = vmatpush1.bf16.msra.mxu0 %v1641
    %1908 = vmatprep.subr.bf16.mxu0 %v1644
    %1909 = vmatpush1.bf16.msra.mxu0 %v1643
    %1910 = vmatprep.subr.bf16.mxu0 %v1646
    %1911 = vmatpush1.bf16.msra.mxu0 %v1645
    %1912 = vmatprep.subr.bf16.mxu0 %v1648
    %1913 = vmatpush1.bf16.msra.mxu0 %v1647
    %1914 = vmatprep.subr.bf16.mxu0 %v1650
    %1915 = vmatpush1.bf16.msra.mxu0 %v1649
    %1916 = vmatprep.subr.bf16.mxu0 %v1652
    %1917 = vmatpush1.bf16.msra.mxu0 %v1651
    %1918 = vmatprep.mubr.bf16.mxu0 %v1060
    %1919 = vmatmul.mubr.bf16.gmra.mrb[0].mxu0 %v1059
    %v1920 = vpop.f32.mrb[0].mxu0
    %v1921 = vadd.f32 %v1880, %v1920
    %v1922 = vpop.f32.mrb[0].mxu0
    %v1923 = vadd.f32 %v1882, %v1922
    %v1924 = vpop.f32.mrb[0].mxu0
    %v1925 = vpop.f32.mrb[0].mxu0
    %1926 = vdwg.mxu0
    %1927 = vmatprep.subr.bf16.mxu0 %v1654
    %1928 = vmatpush1.bf16.msra.mxu0 %v1653
    %1929 = vmatprep.subr.bf16.mxu0 %v1656
    %1930 = vmatpush1.bf16.msra.mxu0 %v1655
    %1931 = vmatprep.subr.bf16.mxu0 %v1658
    %1932 = vmatpush1.bf16.msra.mxu0 %v1657
    %1933 = vmatprep.subr.bf16.mxu0 %v1660
    %1934 = vmatpush1.bf16.msra.mxu0 %v1659
    %1935 = vmatprep.subr.bf16.mxu0 %v1662
    %1936 = vmatpush1.bf16.msra.mxu0 %v1661
    %1937 = vmatprep.subr.bf16.mxu0 %v1664
    %1938 = vmatpush1.bf16.msra.mxu0 %v1663
    %1939 = vmatprep.subr.bf16.mxu0 %v1666
    %1940 = vmatpush1.bf16.msra.mxu0 %v1665
    %1941 = vmatprep.subr.bf16.mxu0 %v1668
    %1942 = vmatpush1.bf16.msra.mxu0 %v1667
    %1943 = vmatprep.subr.bf16.mxu0 %v1670
    %1944 = vmatpush1.bf16.msra.mxu0 %v1669
    %1945 = vmatprep.subr.bf16.mxu0 %v1672
    %1946 = vmatpush1.bf16.msra.mxu0 %v1671
    %1947 = vmatprep.subr.bf16.mxu0 %v1674
    %1948 = vmatpush1.bf16.msra.mxu0 %v1673
    %1949 = vmatprep.subr.bf16.mxu0 %v1676
    %1950 = vmatpush1.bf16.msra.mxu0 %v1675
    %1951 = vmatprep.subr.bf16.mxu0 %v1678
    %1952 = vmatpush1.bf16.msra.mxu0 %v1677
    %1953 = vmatprep.subr.bf16.mxu0 %v1680
    %1954 = vmatpush1.bf16.msra.mxu0 %v1679
    %1955 = vmatprep.subr.bf16.mxu0 %v1682
    %1956 = vmatpush1.bf16.msra.mxu0 %v1681
    %1957 = vmatprep.subr.bf16.mxu0 %v1684
    %1958 = vmatpush1.bf16.msra.mxu0 %v1683
    %1959 = vmatprep.mubr.bf16.mxu0 %v1062
    %1960 = vmatmul.mubr.bf16.gmra.mrb[0].mxu0 %v1061
    %v1961 = vpop.f32.mrb[0].mxu0
    %v1962 = vadd.f32 %v1921, %v1961
    %v1963 = vpop.f32.mrb[0].mxu0
    %v1964 = vadd.f32 %v1923, %v1963
    %v1965 = vpop.f32.mrb[0].mxu0
    %v1966 = vpop.f32.mrb[0].mxu0
    %1967 = vdwg.mxu0
    %1968 = vmatprep.subr.bf16.mxu0 %v1686
    %1969 = vmatpush1.bf16.msra.mxu0 %v1685
    %1970 = vmatprep.subr.bf16.mxu0 %v1688
    %1971 = vmatpush1.bf16.msra.mxu0 %v1687
    %1972 = vmatprep.subr.bf16.mxu0 %v1690
    %1973 = vmatpush1.bf16.msra.mxu0 %v1689
    %1974 = vmatprep.subr.bf16.mxu0 %v1692
    %1975 = vmatpush1.bf16.msra.mxu0 %v1691
    %1976 = vmatprep.subr.bf16.mxu0 %v1694
    %1977 = vmatpush1.bf16.msra.mxu0 %v1693
    %1978 = vmatprep.subr.bf16.mxu0 %v1696
    %1979 = vmatpush1.bf16.msra.mxu0 %v1695
    %1980 = vmatprep.subr.bf16.mxu0 %v1698
    %1981 = vmatpush1.bf16.msra.mxu0 %v1697
    %1982 = vmatprep.subr.bf16.mxu0 %v1700
    %1983 = vmatpush1.bf16.msra.mxu0 %v1699
    %1984 = vmatprep.subr.bf16.mxu0 %v1702
    %1985 = vmatpush1.bf16.msra.mxu0 %v1701
    %1986 = vmatprep.subr.bf16.mxu0 %v1704
    %1987 = vmatpush1.bf16.msra.mxu0 %v1703
    %1988 = vmatprep.subr.bf16.mxu0 %v1706
    %1989 = vmatpush1.bf16.msra.mxu0 %v1705
    %1990 = vmatprep.subr.bf16.mxu0 %v1708
    %1991 = vmatpush1.bf16.msra.mxu0 %v1707
    %1992 = vmatprep.subr.bf16.mxu0 %v1710
    %1993 = vmatpush1.bf16.msra.mxu0 %v1709
    %1994 = vmatprep.subr.bf16.mxu0 %v1712
    %1995 = vmatpush1.bf16.msra.mxu0 %v1711
    %1996 = vmatprep.subr.bf16.mxu0 %v1714
    %1997 = vmatpush1.bf16.msra.mxu0 %v1713
    %1998 = vmatprep.subr.bf16.mxu0 %v1716
    %1999 = vmatpush1.bf16.msra.mxu0 %v1715
    %2000 = vmatprep.mubr.bf16.mxu0 %v1064
    %2001 = vmatmul.mubr.bf16.gmra.mrb[0].mxu0 %v1063
    %v2002 = vpop.f32.mrb[0].mxu0
    %v2003 = vadd.f32 %v1962, %v2002
    %v2004 = vpop.f32.mrb[0].mxu0
    %v2005 = vadd.f32 %v1964, %v2004
    %v2006 = vpop.f32.mrb[0].mxu0
    %v2007 = vpop.f32.mrb[0].mxu0
    %2008 = vdwg.mxu0
    %v2009 = vmax.f32 %v2003, 0.0
    %v2010 = vmax.f32 %v2005, 0.0
    %v2011 = vld [vmem:[%s5] sm:$0x3]
    %v2013 = vlaneseq
    %v2014 = vshrl.u32 %v2013, 7
    %v2015 = vsub.s32 0, %v2014
    %v2016 = vrot.slane %v2011, %v2015
    %v2017 = vlaneseq
    %v2018 = vshrl.u32 %v2017, 7
    %v2019 = vsub.s32 1, %v2018
    %v2020 = vrot.slane %v2011, %v2019
    %v2023 = vmul.f32 %v2009, %v2016
    %v2024 = vmul.f32 %v2010, %v2020
    %v2025 = vadd.f32 %v2023, %v2024
    %2026 = vadd.xlane.f32.xlu0 %v2025
    %v2027 = vpop.xlane.xlu0 %2026
    %v2028 = vld [vmem:[#allocation2] sm:$0x1]
    %v2030 = vlaneseq
    %v2031 = vshrl.u32 %v2030, 7
    %v2032 = vsub.s32 0, %v2031
    %v2033 = vrot.slane %v2028, %v2032
    %v2035 = vadd.f32 %v2027, %v2033
    %v2036 = vxor.u32 %v2035, 2147483648
    %v2037 = vmul.f32 %v2036, 1.442695
    %v2038 = vpow.pop %v2037
    %v2039 = vadd.f32 %v2038, 1.0
    %v2040 = vrcp.pop %v2039
    %v2041 = vmul.f32 1.0, %v2040
    %vm2042 = vcmask 7168
    %2043 = vst.msk [vmem:[%s7] sm:$0xff] %vm2042, %v2041
    // Predicated region
    $region42: #{tpu_custom_call.1} parent=1 // pred_check
      _
    $region43: #{tpu_custom_call.1} parent=1 // pred_check_branch
      %2045 = sbr.rel (0) target = $region45
    $region44: #{tpu_custom_call.1} parent=1 // pred_region
      _
    $region45: #{tpu_custom_call.1} parent=1 // pred_fallthru
      _
    // Predicated region
    $region46: #{tpu_custom_call.1} parent=1 // pred_check
      _
    $region47: #{tpu_custom_call.1} parent=1 // pred_check_branch
      %2047 = sbr.rel (0) target = $region49
    $region48: #{tpu_custom_call.1} parent=1 // pred_region
      _
    $region49: #{tpu_custom_call.1} parent=1 // pred_fallthru
      _
    %2048 = vsyncpa [#allocation4], 1
    %2049 = vsyncpa [#allocation6], 1

</llo_original>
